<compile_context>
chip_gen: v5e
topology: v5e:2x2
jax: 0.10.0
libtpu: 0.0.40
codegen_flags: <defaults>
</compile_context>

<pallas_src>
import jax
import jax.numpy as jnp
from jax.experimental import pallas as pl
from jax.experimental.pallas import tpu as pltpu

EPS = 1e-5
IN_FEATURES = 8
HIDDEN = 64
LANES = 128


def _round_up(n, m):
    return (n + m - 1) // m * m


def _make_kernel(batch, tile_b, needs_mask, matmul_dtype):
    """Build the fused MLP kernel. grid = (3 phases, num batch tiles)."""
    inv_b = 1.0 / float(batch)

    def kernel(x_ref, w1_ref, w2_ref, b1_ref, b2_ref, w3_ref, b3_ref,
               o_ref, m1_ref, r1_ref, m2_ref, r2_ref):
        phase = pl.program_id(0)
        tile = pl.program_id(1)
        last_tile = pl.num_programs(1) - 1

        def mm(a, b):
            return jnp.dot(a.astype(matmul_dtype), b.astype(matmul_dtype),
                           preferred_element_type=jnp.float32)

        def layer1():
            # h1 = relu(W1 @ x + b1)                       (HIDDEN, tile_b)
            return jnp.maximum(mm(w1_ref[...], x_ref[...]) + b1_ref[...], 0.0)

        def layer2(h1n):
            # h2 = relu(W2_fold @ h1n + b2_fold)           (HIDDEN, tile_b)
            return jnp.maximum(mm(w2_ref[...], h1n) + b2_ref[...], 0.0)

        def accumulate(h, sum_ref, sq_ref):
            # One-pass masked stats over the batch (lane) axis.
            if needs_mask:
                col = (jax.lax.broadcasted_iota(jnp.int32, (1, tile_b), 1)
                       + tile * tile_b)
                h = h * (col < batch).astype(jnp.float32)
            s = jnp.sum(h, axis=1, keepdims=True)           # (HIDDEN, 1)
            sq = jnp.sum(h * h, axis=1, keepdims=True)      # (HIDDEN, 1)

            @pl.when(tile == 0)
            def _():
                sum_ref[...] = s
                sq_ref[...] = sq

            @pl.when(tile > 0)
            def _():
                sum_ref[...] += s
                sq_ref[...] += sq

            # Finalize: overwrite the accumulators in place with (mean, rstd).
            @pl.when(tile == last_tile)
            def _():
                mean = sum_ref[...] * inv_b
                var = sq_ref[...] * inv_b - mean * mean
                sum_ref[...] = mean
                sq_ref[...] = jax.lax.rsqrt(var + EPS)

        # Stat phases revisit the output blocks without producing data; write a
        # deterministic value so the intermediate writebacks are not garbage.
        @pl.when(phase < 2)
        def _():
            o_ref[...] = jnp.zeros_like(o_ref)

        # ---- phase 0: BN1 batch statistics ----------------------------------
        @pl.when(phase == 0)
        def _():
            accumulate(layer1(), m1_ref, r1_ref)

        # ---- phase 1: BN2 batch statistics ----------------------------------
        @pl.when(phase == 1)
        def _():
            h1n = (layer1() - m1_ref[...]) * r1_ref[...]
            accumulate(layer2(h1n), m2_ref, r2_ref)

        # ---- phase 2: final output (lane-dense (1, tile_b) row) --------------
        @pl.when(phase == 2)
        def _():
            h1n = (layer1() - m1_ref[...]) * r1_ref[...]
            h2n = (layer2(h1n) - m2_ref[...]) * r2_ref[...]
            # dropout: identity (eval mode)
            o_ref[...] = mm(w3_ref[...], h2n) + b3_ref[...]   # (1, tile_b)

    return kernel


def binary_classification_forward(x, folded, *, block_b=2048,
                                  matmul_dtype=jnp.float32):
    """x: (B, 8) float32; folded: dict from fold_params()."""
    B, f_in = x.shape
    assert f_in == IN_FEATURES
    # PyTorch BatchNorm1d in training mode requires batch size > 1.
    assert B > 1, "BatchNorm1d (training mode) needs batch size > 1"

    # Feature-major: batch on the 128-lane axis; pad batch up to a tile multiple.
    padded_b = _round_up(B, LANES)
    tile_b = min(_round_up(block_b, LANES), padded_b)
    padded_b = _round_up(padded_b, tile_b)
    num_tiles = padded_b // tile_b

    x_fm = x.astype(jnp.float32).T                           # (8, B)
    if padded_b != B:
        x_fm = jnp.pad(x_fm, ((0, 0), (0, padded_b - B)))

    kernel = _make_kernel(B, tile_b, padded_b != B, matmul_dtype)

    def const(ph, t):
        return (0, 0)

    grid_spec = pltpu.PrefetchScalarGridSpec(
        num_scalar_prefetch=0,
        grid=(3, num_tiles),                                 # (phase, batch tile)
        in_specs=[
            pl.BlockSpec((IN_FEATURES, tile_b), lambda ph, t: (0, t)),
            # parameter operands: constant block index -> DMA'd once, VMEM-resident
            pl.BlockSpec((HIDDEN, IN_FEATURES), const),      # W1
            pl.BlockSpec((HIDDEN, HIDDEN), const),           # W2 (BN1 affine folded)
            pl.BlockSpec((HIDDEN, 1), const),                # b1
            pl.BlockSpec((HIDDEN, 1), const),                # b2 (folded)
            pl.BlockSpec((1, HIDDEN), const),                # w3 (BN2 affine folded)
            pl.BlockSpec((1, 1), const),                     # b3 (folded)
        ],
        out_specs=pl.BlockSpec((1, tile_b), lambda ph, t: (0, t)),
        scratch_shapes=[
            pltpu.VMEM((HIDDEN, 1), jnp.float32),            # BN1 mean (sum)
            pltpu.VMEM((HIDDEN, 1), jnp.float32),            # BN1 rstd (sumsq)
            pltpu.VMEM((HIDDEN, 1), jnp.float32),            # BN2 mean (sum)
            pltpu.VMEM((HIDDEN, 1), jnp.float32),            # BN2 rstd (sumsq)
        ],
    )

    out_fm = pl.pallas_call(
        kernel,
        out_shape=jax.ShapeDtypeStruct((1, padded_b), jnp.float32),
        grid_spec=grid_spec,
        compiler_params=pltpu.CompilerParams(
            # BN stat accumulation couples batch tiles and the phases must run
            # in order -> both grid axes are sequential.
            dimension_semantics=("arbitrary", "arbitrary")),
    )(x_fm, folded["w1"], folded["w2"], folded["b1"], folded["b2"],
      folded["w3"], folded["b3"])

    return out_fm[:, :B].T                                   # (B, 1)


# ----------------------------------------------------------------------- params ----
def init_params(key):
    """PyTorch-style init: Linear weights (out, in), uniform(+-1/sqrt(fan_in));
    BatchNorm1d weight=1, bias=0."""
    ks = jax.random.split(key, 6)

    def linear(kw, kb, fan_in, fan_out):
        bound = 1.0 / (fan_in ** 0.5)
        w = jax.random.uniform(kw, (fan_out, fan_in), jnp.float32, -bound, bound)
        b = jax.random.uniform(kb, (fan_out,), jnp.float32, -bound, bound)
        return w, b

    w1, b1 = linear(ks[0], ks[1], IN_FEATURES, HIDDEN)
    w2, b2 = linear(ks[2], ks[3], HIDDEN, HIDDEN)
    w3, b3 = linear(ks[4], ks[5], HIDDEN, 1)
    return {
        "w1": w1, "b1": b1, "w2": w2, "b2": b2, "w3": w3, "b3": b3,
        "g1": jnp.ones((HIDDEN,), jnp.float32), "be1": jnp.zeros((HIDDEN,), jnp.float32),
        "g2": jnp.ones((HIDDEN,), jnp.float32), "be2": jnp.zeros((HIDDEN,), jnp.float32),
    }


def fold_params(p):
    """Fold BN affine params into the next Linear and reshape everything into
    lane-aligned, kernel-ready operands."""
    w2f = p["w2"] * p["g1"][None, :]                     # (64, 64), scale input dims
    b2f = p["w2"] @ p["be1"] + p["b2"]                   # (64,)
    w3f = p["w3"] * p["g2"][None, :]                     # (1, 64)
    b3f = p["w3"] @ p["be2"] + p["b3"]                   # (1,)
    return {
        "w1": p["w1"].astype(jnp.float32),               # (64, 8)
        "b1": p["b1"].astype(jnp.float32)[:, None],      # (64, 1)
        "w2": w2f.astype(jnp.float32),                   # (64, 64)
        "b2": b2f.astype(jnp.float32)[:, None],          # (64, 1)
        "w3": w3f.astype(jnp.float32),                   # (1, 64)
        "b3": b3f.astype(jnp.float32)[:, None],          # (1, 1)
    }


# -------------------------------------------------------------------- reference ----
def reference_forward(x, p):
    """Pure-JAX reference with the exact PyTorch forward structure."""
    h = jnp.maximum(x @ p["w1"].T + p["b1"], 0.0)
    mu = jnp.mean(h, axis=0)
    var = jnp.mean((h - mu) ** 2, axis=0)
    h = (h - mu) * jax.lax.rsqrt(var + EPS) * p["g1"] + p["be1"]
    h = jnp.maximum(h @ p["w2"].T + p["b2"], 0.0)
    mu = jnp.mean(h, axis=0)
    var = jnp.mean((h - mu) ** 2, axis=0)
    h = (h - mu) * jax.lax.rsqrt(var + EPS) * p["g2"] + p["be2"]
    # dropout: identity (eval mode)
    return h @ p["w3"].T + p["b3"]


if __name__ == "__main__":
    key = jax.random.PRNGKey(0)
    k_x, k_p = jax.random.split(key)

    B = 8                                    # small batch (>1 needed for batchnorm)
    x = jax.random.normal(k_x, (B, IN_FEATURES), jnp.float32)
    params = init_params(k_p)
    folded = fold_params(params)

    out = binary_classification_forward(x, folded)
    jax.block_until_ready(out)

    assert out.shape == (B, 1) and out.dtype == jnp.float32
    ref = reference_forward(x, params)
    assert jnp.allclose(out, ref, atol=5e-4, rtol=5e-4), \
        f"max abs err {jnp.max(jnp.abs(out - ref))}"
    print("KERNEL_OK")
</pallas_src>

<mosaic_0001>
module attributes {stable_mosaic.version = 11 : i64} {
  func.func @kernel(%arg0: i32, %arg1: i32, %arg2: memref<8x128xf32, #tpu.memory_space<vmem>>, %arg3: memref<64x8xf32, #tpu.memory_space<vmem>>, %arg4: memref<64x64xf32, #tpu.memory_space<vmem>>, %arg5: memref<64x1xf32, #tpu.memory_space<vmem>>, %arg6: memref<64x1xf32, #tpu.memory_space<vmem>>, %arg7: memref<1x64xf32, #tpu.memory_space<vmem>>, %arg8: memref<1x1xf32, #tpu.memory_space<vmem>>, %arg9: memref<1x128xf32, #tpu.memory_space<vmem>>, %arg10: memref<64x1xf32, #tpu.memory_space<vmem>>, %arg11: memref<64x1xf32, #tpu.memory_space<vmem>>, %arg12: memref<64x1xf32, #tpu.memory_space<vmem>>, %arg13: memref<64x1xf32, #tpu.memory_space<vmem>>) attributes {dimension_semantics = [#tpu.dimension_semantics<arbitrary>, #tpu.dimension_semantics<arbitrary>], iteration_bounds = array<i64: 3, 1>, scalar_prefetch = 0 : i64, scratch_operands = 4 : i64, tpu.core_type = #tpu.core_type<tc>, window_params = [{transform_indices = @transform_0, window_bounds = array<i64: 8, 128>}, {pipeline_mode = #tpu.pipeline_mode<synchronous>, transform_indices = @transform_1, window_bounds = array<i64: 64, 8>}, {pipeline_mode = #tpu.pipeline_mode<synchronous>, transform_indices = @transform_2, window_bounds = array<i64: 64, 64>}, {pipeline_mode = #tpu.pipeline_mode<synchronous>, transform_indices = @transform_3, window_bounds = array<i64: 64, 1>}, {pipeline_mode = #tpu.pipeline_mode<synchronous>, transform_indices = @transform_4, window_bounds = array<i64: 64, 1>}, {pipeline_mode = #tpu.pipeline_mode<synchronous>, transform_indices = @transform_5, window_bounds = array<i64: 1, 64>}, {pipeline_mode = #tpu.pipeline_mode<synchronous>, transform_indices = @transform_6, window_bounds = array<i64: 1, 1>}, {transform_indices = @transform_7, window_bounds = array<i64: 1, 128>}]} {
    %c2_i32 = arith.constant 2 : i32
    %0 = arith.cmpi slt, %arg0, %c2_i32 : i32
    %1 = arith.extui %0 : i1 to i32
    %c0_i32 = arith.constant 0 : i32
    %2 = arith.cmpi ne, %1, %c0_i32 : i32
    scf.if %2 {
      %cst = arith.constant 0.000000e+00 : f32
      %12 = vector.broadcast %cst : f32 to vector<1x128xf32>
      %c0 = arith.constant 0 : index
      %c0_5 = arith.constant 0 : index
      %13 = vector.load %arg9[%c0, %c0_5] : memref<1x128xf32, #tpu.memory_space<vmem>>, vector<1x128xf32>
      tpu.vector_store %arg9[%c0, %c0_5], %12 {strides = array<i32>} : memref<1x128xf32, #tpu.memory_space<vmem>>, vector<1x128xf32>,
    } else {
    }
    %c0_i32_0 = arith.constant 0 : i32
    %3 = arith.cmpi eq, %arg0, %c0_i32_0 : i32
    %4 = arith.extui %3 : i1 to i32
    %c0_i32_1 = arith.constant 0 : i32
    %5 = arith.cmpi ne, %4, %c0_i32_1 : i32
    scf.if %5 {
      %c0 = arith.constant 0 : index
      %c0_5 = arith.constant 0 : index
      %12 = vector.load %arg3[%c0, %c0_5] : memref<64x8xf32, #tpu.memory_space<vmem>>, vector<64x8xf32>
      %c0_6 = arith.constant 0 : index
      %c0_7 = arith.constant 0 : index
      %13 = vector.load %arg2[%c0_6, %c0_7] : memref<8x128xf32, #tpu.memory_space<vmem>>, vector<8x128xf32>
      %cst = arith.constant dense<0.000000e+00> : vector<64x128xf32>
      %14 = tpu.matmul %12, %13, %cst {dimension_numbers = #tpu.dot_dimension_numbers<[1], [0], [0], [1], [0, 0, 1, 1], [], []>} : vector<64x8xf32>, vector<8x128xf32>, vector<64x128xf32> -> vector<64x128xf32>
      %c0_8 = arith.constant 0 : index
      %c0_9 = arith.constant 0 : index
      %15 = vector.load %arg5[%c0_8, %c0_9] : memref<64x1xf32, #tpu.memory_space<vmem>>, vector<64x1xf32>
      %16 = vector.broadcast %15 : vector<64x1xf32> to vector<64x128xf32>
      %17 = arith.addf %14, %16 : vector<64x128xf32>
      %cst_10 = arith.constant 0.000000e+00 : f32
      %18 = vector.broadcast %cst_10 : f32 to vector<64x128xf32>
      %19 = arith.maximumf %17, %18 : vector<64x128xf32>
      %20 = tpu.iota {dimensions = array<i32: 1>} : vector<1x128xi32>
      %c128_i32 = arith.constant 128 : i32
      %21 = arith.muli %arg1, %c128_i32 : i32
      %22 = vector.broadcast %21 : i32 to vector<1x128xi32>
      %23 = arith.addi %20, %22 : vector<1x128xi32>
      %c8_i32 = arith.constant 8 : i32
      %24 = vector.broadcast %c8_i32 : i32 to vector<1x128xi32>
      %25 = arith.cmpi slt, %23, %24 : vector<1x128xi32>
      %26 = arith.extui %25 : vector<1x128xi1> to vector<1x128xi32>
      %27 = arith.sitofp %26 : vector<1x128xi32> to vector<1x128xf32>
      %28 = vector.broadcast %27 : vector<1x128xf32> to vector<64x128xf32>
      %29 = arith.mulf %19, %28 : vector<64x128xf32>
      %cst_11 = arith.constant dense<0.000000e+00> : vector<64xf32>
      %30 = vector.multi_reduction <add>, %29, %cst_11 [1] : vector<64x128xf32> to vector<64xf32>
      %31 = vector.shape_cast %30 : vector<64xf32> to vector<64x1xf32>
      %32 = arith.mulf %29, %29 : vector<64x128xf32>
      %cst_12 = arith.constant dense<0.000000e+00> : vector<64xf32>
      %33 = vector.multi_reduction <add>, %32, %cst_12 [1] : vector<64x128xf32> to vector<64xf32>
      %34 = vector.shape_cast %33 : vector<64xf32> to vector<64x1xf32>
      %c0_i32_13 = arith.constant 0 : i32
      %35 = arith.cmpi eq, %arg1, %c0_i32_13 : i32
      %36 = arith.extui %35 : i1 to i32
      %c0_i32_14 = arith.constant 0 : i32
      %37 = arith.cmpi ne, %36, %c0_i32_14 : i32
      scf.if %37 {
        %c0_19 = arith.constant 0 : index
        %c0_20 = arith.constant 0 : index
        %44 = vector.load %arg10[%c0_19, %c0_20] : memref<64x1xf32, #tpu.memory_space<vmem>>, vector<64x1xf32>
        tpu.vector_store %arg10[%c0_19, %c0_20], %31 {strides = array<i32>} : memref<64x1xf32, #tpu.memory_space<vmem>>, vector<64x1xf32>,
        %c0_21 = arith.constant 0 : index
        %c0_22 = arith.constant 0 : index
        %45 = vector.load %arg11[%c0_21, %c0_22] : memref<64x1xf32, #tpu.memory_space<vmem>>, vector<64x1xf32>
        tpu.vector_store %arg11[%c0_21, %c0_22], %34 {strides = array<i32>} : memref<64x1xf32, #tpu.memory_space<vmem>>, vector<64x1xf32>,
      } else {
      }
      %c0_i32_15 = arith.constant 0 : i32
      %38 = arith.cmpi sgt, %arg1, %c0_i32_15 : i32
      %39 = arith.extui %38 : i1 to i32
      %c0_i32_16 = arith.constant 0 : i32
      %40 = arith.cmpi ne, %39, %c0_i32_16 : i32
      scf.if %40 {
        %c0_19 = arith.constant 0 : index
        %c0_20 = arith.constant 0 : index
        %44 = vector.load %arg10[%c0_19, %c0_20] : memref<64x1xf32, #tpu.memory_space<vmem>>, vector<64x1xf32>
        %45 = arith.addf %44, %31 : vector<64x1xf32>
        %c0_21 = arith.constant 0 : index
        %c0_22 = arith.constant 0 : index
        %46 = vector.load %arg10[%c0_21, %c0_22] : memref<64x1xf32, #tpu.memory_space<vmem>>, vector<64x1xf32>
        tpu.vector_store %arg10[%c0_21, %c0_22], %45 {strides = array<i32>} : memref<64x1xf32, #tpu.memory_space<vmem>>, vector<64x1xf32>,
        %c0_23 = arith.constant 0 : index
        %c0_24 = arith.constant 0 : index
        %47 = vector.load %arg11[%c0_23, %c0_24] : memref<64x1xf32, #tpu.memory_space<vmem>>, vector<64x1xf32>
        %48 = arith.addf %47, %34 : vector<64x1xf32>
        %c0_25 = arith.constant 0 : index
        %c0_26 = arith.constant 0 : index
        %49 = vector.load %arg11[%c0_25, %c0_26] : memref<64x1xf32, #tpu.memory_space<vmem>>, vector<64x1xf32>
        tpu.vector_store %arg11[%c0_25, %c0_26], %48 {strides = array<i32>} : memref<64x1xf32, #tpu.memory_space<vmem>>, vector<64x1xf32>,
      } else {
      }
      %c0_i32_17 = arith.constant 0 : i32
      %41 = arith.cmpi eq, %arg1, %c0_i32_17 : i32
      %42 = arith.extui %41 : i1 to i32
      %c0_i32_18 = arith.constant 0 : i32
      %43 = arith.cmpi ne, %42, %c0_i32_18 : i32
      scf.if %43 {
        %c0_19 = arith.constant 0 : index
        %c0_20 = arith.constant 0 : index
        %44 = vector.load %arg10[%c0_19, %c0_20] : memref<64x1xf32, #tpu.memory_space<vmem>>, vector<64x1xf32>
        %cst_21 = arith.constant 1.250000e-01 : f32
        %45 = vector.broadcast %cst_21 : f32 to vector<64x1xf32>
        %46 = arith.mulf %44, %45 : vector<64x1xf32>
        %c0_22 = arith.constant 0 : index
        %c0_23 = arith.constant 0 : index
        %47 = vector.load %arg11[%c0_22, %c0_23] : memref<64x1xf32, #tpu.memory_space<vmem>>, vector<64x1xf32>
        %cst_24 = arith.constant 1.250000e-01 : f32
        %48 = vector.broadcast %cst_24 : f32 to vector<64x1xf32>
        %49 = arith.mulf %47, %48 : vector<64x1xf32>
        %50 = arith.mulf %46, %46 : vector<64x1xf32>
        %51 = arith.subf %49, %50 : vector<64x1xf32>
        %c0_25 = arith.constant 0 : index
        %c0_26 = arith.constant 0 : index
        %52 = vector.load %arg10[%c0_25, %c0_26] : memref<64x1xf32, #tpu.memory_space<vmem>>, vector<64x1xf32>
        tpu.vector_store %arg10[%c0_25, %c0_26], %46 {strides = array<i32>} : memref<64x1xf32, #tpu.memory_space<vmem>>, vector<64x1xf32>,
        %cst_27 = arith.constant 9.99999974E-6 : f32
        %53 = vector.broadcast %cst_27 : f32 to vector<64x1xf32>
        %54 = arith.addf %51, %53 : vector<64x1xf32>
        %55 = math.rsqrt %54 : vector<64x1xf32>
        %c0_28 = arith.constant 0 : index
        %c0_29 = arith.constant 0 : index
        %56 = vector.load %arg11[%c0_28, %c0_29] : memref<64x1xf32, #tpu.memory_space<vmem>>, vector<64x1xf32>
        tpu.vector_store %arg11[%c0_28, %c0_29], %55 {strides = array<i32>} : memref<64x1xf32, #tpu.memory_space<vmem>>, vector<64x1xf32>,
      } else {
      }
    } else {
    }
    %c1_i32 = arith.constant 1 : i32
    %6 = arith.cmpi eq, %arg0, %c1_i32 : i32
    %7 = arith.extui %6 : i1 to i32
    %c0_i32_2 = arith.constant 0 : i32
    %8 = arith.cmpi ne, %7, %c0_i32_2 : i32
    scf.if %8 {
      %c0 = arith.constant 0 : index
      %c0_5 = arith.constant 0 : index
      %12 = vector.load %arg3[%c0, %c0_5] : memref<64x8xf32, #tpu.memory_space<vmem>>, vector<64x8xf32>
      %c0_6 = arith.constant 0 : index
      %c0_7 = arith.constant 0 : index
      %13 = vector.load %arg2[%c0_6, %c0_7] : memref<8x128xf32, #tpu.memory_space<vmem>>, vector<8x128xf32>
      %cst = arith.constant dense<0.000000e+00> : vector<64x128xf32>
      %14 = tpu.matmul %12, %13, %cst {dimension_numbers = #tpu.dot_dimension_numbers<[1], [0], [0], [1], [0, 0, 1, 1], [], []>} : vector<64x8xf32>, vector<8x128xf32>, vector<64x128xf32> -> vector<64x128xf32>
      %c0_8 = arith.constant 0 : index
      %c0_9 = arith.constant 0 : index
      %15 = vector.load %arg5[%c0_8, %c0_9] : memref<64x1xf32, #tpu.memory_space<vmem>>, vector<64x1xf32>
      %16 = vector.broadcast %15 : vector<64x1xf32> to vector<64x128xf32>
      %17 = arith.addf %14, %16 : vector<64x128xf32>
      %cst_10 = arith.constant 0.000000e+00 : f32
      %18 = vector.broadcast %cst_10 : f32 to vector<64x128xf32>
      %19 = arith.maximumf %17, %18 : vector<64x128xf32>
      %c0_11 = arith.constant 0 : index
      %c0_12 = arith.constant 0 : index
      %20 = vector.load %arg10[%c0_11, %c0_12] : memref<64x1xf32, #tpu.memory_space<vmem>>, vector<64x1xf32>
      %21 = vector.broadcast %20 : vector<64x1xf32> to vector<64x128xf32>
      %22 = arith.subf %19, %21 : vector<64x128xf32>
      %c0_13 = arith.constant 0 : index
      %c0_14 = arith.constant 0 : index
      %23 = vector.load %arg11[%c0_13, %c0_14] : memref<64x1xf32, #tpu.memory_space<vmem>>, vector<64x1xf32>
      %24 = vector.broadcast %23 : vector<64x1xf32> to vector<64x128xf32>
      %25 = arith.mulf %22, %24 : vector<64x128xf32>
      %c0_15 = arith.constant 0 : index
      %c0_16 = arith.constant 0 : index
      %26 = vector.load %arg4[%c0_15, %c0_16] : memref<64x64xf32, #tpu.memory_space<vmem>>, vector<64x64xf32>
      %cst_17 = arith.constant dense<0.000000e+00> : vector<64x128xf32>
      %27 = tpu.matmul %26, %25, %cst_17 {dimension_numbers = #tpu.dot_dimension_numbers<[1], [0], [0], [1], [0, 0, 1, 1], [], []>} : vector<64x64xf32>, vector<64x128xf32>, vector<64x128xf32> -> vector<64x128xf32>
      %c0_18 = arith.constant 0 : index
      %c0_19 = arith.constant 0 : index
      %28 = vector.load %arg6[%c0_18, %c0_19] : memref<64x1xf32, #tpu.memory_space<vmem>>, vector<64x1xf32>
      %29 = vector.broadcast %28 : vector<64x1xf32> to vector<64x128xf32>
      %30 = arith.addf %27, %29 : vector<64x128xf32>
      %cst_20 = arith.constant 0.000000e+00 : f32
      %31 = vector.broadcast %cst_20 : f32 to vector<64x128xf32>
      %32 = arith.maximumf %30, %31 : vector<64x128xf32>
      %33 = tpu.iota {dimensions = array<i32: 1>} : vector<1x128xi32>
      %c128_i32 = arith.constant 128 : i32
      %34 = arith.muli %arg1, %c128_i32 : i32
      %35 = vector.broadcast %34 : i32 to vector<1x128xi32>
      %36 = arith.addi %33, %35 : vector<1x128xi32>
      %c8_i32 = arith.constant 8 : i32
      %37 = vector.broadcast %c8_i32 : i32 to vector<1x128xi32>
      %38 = arith.cmpi slt, %36, %37 : vector<1x128xi32>
      %39 = arith.extui %38 : vector<1x128xi1> to vector<1x128xi32>
      %40 = arith.sitofp %39 : vector<1x128xi32> to vector<1x128xf32>
      %41 = vector.broadcast %40 : vector<1x128xf32> to vector<64x128xf32>
      %42 = arith.mulf %32, %41 : vector<64x128xf32>
      %cst_21 = arith.constant dense<0.000000e+00> : vector<64xf32>
      %43 = vector.multi_reduction <add>, %42, %cst_21 [1] : vector<64x128xf32> to vector<64xf32>
      %44 = vector.shape_cast %43 : vector<64xf32> to vector<64x1xf32>
      %45 = arith.mulf %42, %42 : vector<64x128xf32>
      %cst_22 = arith.constant dense<0.000000e+00> : vector<64xf32>
      %46 = vector.multi_reduction <add>, %45, %cst_22 [1] : vector<64x128xf32> to vector<64xf32>
      %47 = vector.shape_cast %46 : vector<64xf32> to vector<64x1xf32>
      %c0_i32_23 = arith.constant 0 : i32
      %48 = arith.cmpi eq, %arg1, %c0_i32_23 : i32
      %49 = arith.extui %48 : i1 to i32
      %c0_i32_24 = arith.constant 0 : i32
      %50 = arith.cmpi ne, %49, %c0_i32_24 : i32
      scf.if %50 {
        %c0_29 = arith.constant 0 : index
        %c0_30 = arith.constant 0 : index
        %57 = vector.load %arg12[%c0_29, %c0_30] : memref<64x1xf32, #tpu.memory_space<vmem>>, vector<64x1xf32>
        tpu.vector_store %arg12[%c0_29, %c0_30], %44 {strides = array<i32>} : memref<64x1xf32, #tpu.memory_space<vmem>>, vector<64x1xf32>,
        %c0_31 = arith.constant 0 : index
        %c0_32 = arith.constant 0 : index
        %58 = vector.load %arg13[%c0_31, %c0_32] : memref<64x1xf32, #tpu.memory_space<vmem>>, vector<64x1xf32>
        tpu.vector_store %arg13[%c0_31, %c0_32], %47 {strides = array<i32>} : memref<64x1xf32, #tpu.memory_space<vmem>>, vector<64x1xf32>,
      } else {
      }
      %c0_i32_25 = arith.constant 0 : i32
      %51 = arith.cmpi sgt, %arg1, %c0_i32_25 : i32
      %52 = arith.extui %51 : i1 to i32
      %c0_i32_26 = arith.constant 0 : i32
      %53 = arith.cmpi ne, %52, %c0_i32_26 : i32
      scf.if %53 {
        %c0_29 = arith.constant 0 : index
        %c0_30 = arith.constant 0 : index
        %57 = vector.load %arg12[%c0_29, %c0_30] : memref<64x1xf32, #tpu.memory_space<vmem>>, vector<64x1xf32>
        %58 = arith.addf %57, %44 : vector<64x1xf32>
        %c0_31 = arith.constant 0 : index
        %c0_32 = arith.constant 0 : index
        %59 = vector.load %arg12[%c0_31, %c0_32] : memref<64x1xf32, #tpu.memory_space<vmem>>, vector<64x1xf32>
        tpu.vector_store %arg12[%c0_31, %c0_32], %58 {strides = array<i32>} : memref<64x1xf32, #tpu.memory_space<vmem>>, vector<64x1xf32>,
        %c0_33 = arith.constant 0 : index
        %c0_34 = arith.constant 0 : index
        %60 = vector.load %arg13[%c0_33, %c0_34] : memref<64x1xf32, #tpu.memory_space<vmem>>, vector<64x1xf32>
        %61 = arith.addf %60, %47 : vector<64x1xf32>
        %c0_35 = arith.constant 0 : index
        %c0_36 = arith.constant 0 : index
        %62 = vector.load %arg13[%c0_35, %c0_36] : memref<64x1xf32, #tpu.memory_space<vmem>>, vector<64x1xf32>
        tpu.vector_store %arg13[%c0_35, %c0_36], %61 {strides = array<i32>} : memref<64x1xf32, #tpu.memory_space<vmem>>, vector<64x1xf32>,
      } else {
      }
      %c0_i32_27 = arith.constant 0 : i32
      %54 = arith.cmpi eq, %arg1, %c0_i32_27 : i32
      %55 = arith.extui %54 : i1 to i32
      %c0_i32_28 = arith.constant 0 : i32
      %56 = arith.cmpi ne, %55, %c0_i32_28 : i32
      scf.if %56 {
        %c0_29 = arith.constant 0 : index
        %c0_30 = arith.constant 0 : index
        %57 = vector.load %arg12[%c0_29, %c0_30] : memref<64x1xf32, #tpu.memory_space<vmem>>, vector<64x1xf32>
        %cst_31 = arith.constant 1.250000e-01 : f32
        %58 = vector.broadcast %cst_31 : f32 to vector<64x1xf32>
        %59 = arith.mulf %57, %58 : vector<64x1xf32>
        %c0_32 = arith.constant 0 : index
        %c0_33 = arith.constant 0 : index
        %60 = vector.load %arg13[%c0_32, %c0_33] : memref<64x1xf32, #tpu.memory_space<vmem>>, vector<64x1xf32>
        %cst_34 = arith.constant 1.250000e-01 : f32
        %61 = vector.broadcast %cst_34 : f32 to vector<64x1xf32>
        %62 = arith.mulf %60, %61 : vector<64x1xf32>
        %63 = arith.mulf %59, %59 : vector<64x1xf32>
        %64 = arith.subf %62, %63 : vector<64x1xf32>
        %c0_35 = arith.constant 0 : index
        %c0_36 = arith.constant 0 : index
        %65 = vector.load %arg12[%c0_35, %c0_36] : memref<64x1xf32, #tpu.memory_space<vmem>>, vector<64x1xf32>
        tpu.vector_store %arg12[%c0_35, %c0_36], %59 {strides = array<i32>} : memref<64x1xf32, #tpu.memory_space<vmem>>, vector<64x1xf32>,
        %cst_37 = arith.constant 9.99999974E-6 : f32
        %66 = vector.broadcast %cst_37 : f32 to vector<64x1xf32>
        %67 = arith.addf %64, %66 : vector<64x1xf32>
        %68 = math.rsqrt %67 : vector<64x1xf32>
        %c0_38 = arith.constant 0 : index
        %c0_39 = arith.constant 0 : index
        %69 = vector.load %arg13[%c0_38, %c0_39] : memref<64x1xf32, #tpu.memory_space<vmem>>, vector<64x1xf32>
        tpu.vector_store %arg13[%c0_38, %c0_39], %68 {strides = array<i32>} : memref<64x1xf32, #tpu.memory_space<vmem>>, vector<64x1xf32>,
      } else {
      }
    } else {
    }
    %c2_i32_3 = arith.constant 2 : i32
    %9 = arith.cmpi eq, %arg0, %c2_i32_3 : i32
    %10 = arith.extui %9 : i1 to i32
    %c0_i32_4 = arith.constant 0 : i32
    %11 = arith.cmpi ne, %10, %c0_i32_4 : i32
    scf.if %11 {
      %c0 = arith.constant 0 : index
      %c0_5 = arith.constant 0 : index
      %12 = vector.load %arg3[%c0, %c0_5] : memref<64x8xf32, #tpu.memory_space<vmem>>, vector<64x8xf32>
      %c0_6 = arith.constant 0 : index
      %c0_7 = arith.constant 0 : index
      %13 = vector.load %arg2[%c0_6, %c0_7] : memref<8x128xf32, #tpu.memory_space<vmem>>, vector<8x128xf32>
      %cst = arith.constant dense<0.000000e+00> : vector<64x128xf32>
      %14 = tpu.matmul %12, %13, %cst {dimension_numbers = #tpu.dot_dimension_numbers<[1], [0], [0], [1], [0, 0, 1, 1], [], []>} : vector<64x8xf32>, vector<8x128xf32>, vector<64x128xf32> -> vector<64x128xf32>
      %c0_8 = arith.constant 0 : index
      %c0_9 = arith.constant 0 : index
      %15 = vector.load %arg5[%c0_8, %c0_9] : memref<64x1xf32, #tpu.memory_space<vmem>>, vector<64x1xf32>
      %16 = vector.broadcast %15 : vector<64x1xf32> to vector<64x128xf32>
      %17 = arith.addf %14, %16 : vector<64x128xf32>
      %cst_10 = arith.constant 0.000000e+00 : f32
      %18 = vector.broadcast %cst_10 : f32 to vector<64x128xf32>
      %19 = arith.maximumf %17, %18 : vector<64x128xf32>
      %c0_11 = arith.constant 0 : index
      %c0_12 = arith.constant 0 : index
      %20 = vector.load %arg10[%c0_11, %c0_12] : memref<64x1xf32, #tpu.memory_space<vmem>>, vector<64x1xf32>
      %21 = vector.broadcast %20 : vector<64x1xf32> to vector<64x128xf32>
      %22 = arith.subf %19, %21 : vector<64x128xf32>
      %c0_13 = arith.constant 0 : index
      %c0_14 = arith.constant 0 : index
      %23 = vector.load %arg11[%c0_13, %c0_14] : memref<64x1xf32, #tpu.memory_space<vmem>>, vector<64x1xf32>
      %24 = vector.broadcast %23 : vector<64x1xf32> to vector<64x128xf32>
      %25 = arith.mulf %22, %24 : vector<64x128xf32>
      %c0_15 = arith.constant 0 : index
      %c0_16 = arith.constant 0 : index
      %26 = vector.load %arg4[%c0_15, %c0_16] : memref<64x64xf32, #tpu.memory_space<vmem>>, vector<64x64xf32>
      %cst_17 = arith.constant dense<0.000000e+00> : vector<64x128xf32>
      %27 = tpu.matmul %26, %25, %cst_17 {dimension_numbers = #tpu.dot_dimension_numbers<[1], [0], [0], [1], [0, 0, 1, 1], [], []>} : vector<64x64xf32>, vector<64x128xf32>, vector<64x128xf32> -> vector<64x128xf32>
      %c0_18 = arith.constant 0 : index
      %c0_19 = arith.constant 0 : index
      %28 = vector.load %arg6[%c0_18, %c0_19] : memref<64x1xf32, #tpu.memory_space<vmem>>, vector<64x1xf32>
      %29 = vector.broadcast %28 : vector<64x1xf32> to vector<64x128xf32>
      %30 = arith.addf %27, %29 : vector<64x128xf32>
      %cst_20 = arith.constant 0.000000e+00 : f32
      %31 = vector.broadcast %cst_20 : f32 to vector<64x128xf32>
      %32 = arith.maximumf %30, %31 : vector<64x128xf32>
      %c0_21 = arith.constant 0 : index
      %c0_22 = arith.constant 0 : index
      %33 = vector.load %arg12[%c0_21, %c0_22] : memref<64x1xf32, #tpu.memory_space<vmem>>, vector<64x1xf32>
      %34 = vector.broadcast %33 : vector<64x1xf32> to vector<64x128xf32>
      %35 = arith.subf %32, %34 : vector<64x128xf32>
      %c0_23 = arith.constant 0 : index
      %c0_24 = arith.constant 0 : index
      %36 = vector.load %arg13[%c0_23, %c0_24] : memref<64x1xf32, #tpu.memory_space<vmem>>, vector<64x1xf32>
      %37 = vector.broadcast %36 : vector<64x1xf32> to vector<64x128xf32>
      %38 = arith.mulf %35, %37 : vector<64x128xf32>
      %c0_25 = arith.constant 0 : index
      %c0_26 = arith.constant 0 : index
      %39 = vector.load %arg7[%c0_25, %c0_26] : memref<1x64xf32, #tpu.memory_space<vmem>>, vector<1x64xf32>
      %cst_27 = arith.constant dense<0.000000e+00> : vector<1x128xf32>
      %40 = tpu.matmul %39, %38, %cst_27 {dimension_numbers = #tpu.dot_dimension_numbers<[1], [0], [0], [1], [0, 0, 1, 1], [], []>} : vector<1x64xf32>, vector<64x128xf32>, vector<1x128xf32> -> vector<1x128xf32>
      %c0_28 = arith.constant 0 : index
      %c0_29 = arith.constant 0 : index
      %41 = vector.load %arg8[%c0_28, %c0_29] : memref<1x1xf32, #tpu.memory_space<vmem>>, vector<1x1xf32>
      %42 = vector.broadcast %41 : vector<1x1xf32> to vector<1x128xf32>
      %43 = arith.addf %40, %42 : vector<1x128xf32>
      %c0_30 = arith.constant 0 : index
      %c0_31 = arith.constant 0 : index
      %44 = vector.load %arg9[%c0_30, %c0_31] : memref<1x128xf32, #tpu.memory_space<vmem>>, vector<1x128xf32>
      tpu.vector_store %arg9[%c0_30, %c0_31], %43 {strides = array<i32>} : memref<1x128xf32, #tpu.memory_space<vmem>>, vector<1x128xf32>,
    } else {
    }
    return
  }
  func.func @transform_0(%arg0: i32, %arg1: i32) -> (i32, i32) {
    %c0_i32 = arith.constant 0 : i32
    %c0_i32_0 = arith.constant 0 : i32
    return %c0_i32, %arg1 : i32, i32
  }
  func.func @transform_1(%arg0: i32, %arg1: i32) -> (i32, i32) {
    %c0_i32 = arith.constant 0 : i32
    %c0_i32_0 = arith.constant 0 : i32
    %c0_i32_1 = arith.constant 0 : i32
    return %c0_i32, %c0_i32_0 : i32, i32
  }
  func.func @transform_2(%arg0: i32, %arg1: i32) -> (i32, i32) {
    %c0_i32 = arith.constant 0 : i32
    %c0_i32_0 = arith.constant 0 : i32
    %c0_i32_1 = arith.constant 0 : i32
    return %c0_i32, %c0_i32_0 : i32, i32
  }
  func.func @transform_3(%arg0: i32, %arg1: i32) -> (i32, i32) {
    %c0_i32 = arith.constant 0 : i32
    %c0_i32_0 = arith.constant 0 : i32
    %c0_i32_1 = arith.constant 0 : i32
    return %c0_i32, %c0_i32_0 : i32, i32
  }
  func.func @transform_4(%arg0: i32, %arg1: i32) -> (i32, i32) {
    %c0_i32 = arith.constant 0 : i32
    %c0_i32_0 = arith.constant 0 : i32
    %c0_i32_1 = arith.constant 0 : i32
    return %c0_i32, %c0_i32_0 : i32, i32
  }
  func.func @transform_5(%arg0: i32, %arg1: i32) -> (i32, i32) {
    %c0_i32 = arith.constant 0 : i32
    %c0_i32_0 = arith.constant 0 : i32
    %c0_i32_1 = arith.constant 0 : i32
    return %c0_i32, %c0_i32_0 : i32, i32
  }
  func.func @transform_6(%arg0: i32, %arg1: i32) -> (i32, i32) {
    %c0_i32 = arith.constant 0 : i32
    %c0_i32_0 = arith.constant 0 : i32
    %c0_i32_1 = arith.constant 0 : i32
    return %c0_i32, %c0_i32_0 : i32, i32
  }
  func.func @transform_7(%arg0: i32, %arg1: i32) -> (i32, i32) {
    %c0_i32 = arith.constant 0 : i32
    %c0_i32_0 = arith.constant 0 : i32
    return %c0_i32, %arg1 : i32, i32
  }
}

</mosaic_0001>

<llo_original>
// kernel: tpu_custom_call.1
$region0: #{tpu_custom_call.1}
  #allocation0 [shape = 'u32[]', space=smem, size = 0x4, offset = 0x4, fixed_abs, tag = 'smem constant byte address 0x4 - core index']
  #allocation1 [shape = 'u32[72,128]{1,0:T(1,128)}', space=vmem, size = 0x9000, scoped, tag = 'internal scratch']
  #allocation2 [shape = 'f32[64,1]{1,0:T(8,128)}', space=vmem, size = 0x8000, scoped, tag = 'scratch operand']
  #allocation3 [shape = 'f32[64,1]{1,0:T(8,128)}', space=vmem, size = 0x8000, scoped, tag = 'scratch operand']
  #allocation4 [shape = 'f32[64,1]{1,0:T(8,128)}', space=vmem, size = 0x8000, scoped, tag = 'scratch operand']
  #allocation5 [shape = 'f32[64,1]{1,0:T(8,128)}', space=vmem, size = 0x8000, scoped, tag = 'scratch operand']
  #allocation6 [shape = 'f32[1,1]{1,0:T(1,128)S(1)}', space=vmem, size = 0x200, scoped, tag = 'scoped memory for tpu_custom_call.1']
  %s0 = inlined_call_operand.vmem [shape: f32[8,128], index: 0, kind: input, shape index: {}]
  %s1 = inlined_call_operand.vmem [shape: f32[64,8], index: 1, kind: input, shape index: {}]
  %s2 = inlined_call_operand.vmem [shape: f32[64,64], index: 2, kind: input, shape index: {}]
  %s3 = inlined_call_operand.vmem [shape: f32[64,1], index: 3, kind: input, shape index: {}]
  %s4 = inlined_call_operand.vmem [shape: f32[64,1], index: 4, kind: input, shape index: {}]
  %s5 = inlined_call_operand.vmem [shape: f32[1,64], index: 5, kind: input, shape index: {}]
  %s6 = inlined_call_operand.<no memory space> [shape: f32[1,1], index: 6, kind: input, shape index: {}]
  %s7 = inlined_call_operand.hbm [shape: f32[1,128], index: 7, kind: output, shape index: {}]
  %s8 = sld [smem:[#allocation0]]
  $region101: #{tpu_custom_call.1} parent=0
    _
  %s10 = ssub.s32 1, %s8
  %s11 = scalar_select 0, %s10, %s8
  %v12 = vstv %s6
  %13 = vst [vmem:[#allocation6] sm:$0x1] %v12
  $region1: #{tpu_custom_call.1} parent=0
    #allocation7 [shape = 'u8[512]{0}', space=vmem, size = 0x400, scoped, tag = 'output window, operand 0, single buffered']
    #allocation8 [shape = 's32[2]{0}', space=sflag, size = 0x8, scoped, tag = 'scoped memory for tpu_custom_call.1']
    %14 = vsyncpa [#allocation8], 0
    loop: start=0, step=1, limit=5
    $region2: #{tpu_custom_call.1} parent=1 // loop_pre_header
      _
    $region3: #{tpu_custom_call.1} parent=1 // loop_header
      %s16 = sphi 0, %s20
      %p17 = scmp.ge.s32.totalorder %s16, 5
      %s23 = sphi 0, %s35
      %s24 = sphi 0, %s31
      %s25 = sphi 0, %s23
      %s26 = sphi 0, %s24
      %s27 = sphi 0, %s25
      %s28 = sphi 0, %s26
      %s38 = sphi 0, %s40
      %s41 = sphi 0, %s38
      %s42 = sphi 0, %s41
      %s58 = sphi 0, %s42
      %s62 = sphi 0, %s62
      %s64 = sphi 0, %s62
      %s65 = sphi 0, %s64
      %s79 = sphi 0, %s65
      %s83 = sphi 0, %s83
      %s85 = sphi 0, %s83
      %s86 = sphi 0, %s85
      %s100 = sphi 0, %s86
      %s104 = sphi 0, %s104
      %s106 = sphi 0, %s104
      %s107 = sphi 0, %s106
      %s121 = sphi 0, %s107
      %s125 = sphi 0, %s125
      %s127 = sphi 0, %s125
      %s128 = sphi 0, %s127
      %s142 = sphi 0, %s128
      %s146 = sphi 0, %s146
      %s148 = sphi 0, %s146
      %s149 = sphi 0, %s148
      %s163 = sphi 0, %s149
      %s167 = sphi 0, %s167
      %s169 = sphi 0, %s167
      %s170 = sphi 0, %s169
      %s184 = sphi 0, %s170
      %s190 = sphi 0, %s192
      %s193 = sphi 0, %s190
      %s194 = sphi 0, %s193
      %s210 = sphi 0, %s194
    $region4: #{tpu_custom_call.1} parent=1 // loop_header_branch
      %19 = sbr.rel (%p17) target = $region8
    $region5: #{tpu_custom_call.1} parent=1 // loop_body
      %s21 = ssub.s32 %s16, 1
      %s22 = ssub.s32 %s16, 2
      %s29 = sadd.s32 1, %s24
      %p30 = scmp.ge.s32.totalorder %s29, 1
      %s31 = scalar_select %p30, 0, %s29
      %s32 = sadd.s32 1, %s23
      %s33 = scalar_select %p30, %s32, %s23
      %p34 = scmp.ge.s32.totalorder %s33, 3
      %s35 = scalar_select %p34, 0, %s33
      %s36 = ssub.s32 %s24, %s31
      %p37 = scmp.eq.s32.totalorder %s36, 0
      %s39 = sadd.s32 %s38, 1
      %s40 = scalar_select %p37, %s38, %s39
      %p43 = pneg %p37
      %p44 = scmp.eq.s32.totalorder %s16, 2
      %p45 = por %p43, %p44
      %p46 = scmp.ne.s32.totalorder %s38, %s41
      %p47 = scmp.eq.s32.totalorder %s16, 0
      %p48 = por %p46, %p47
      %p49 = scmp.ne.s32.totalorder %s38, %s41
      %p50 = scmp.eq.s32.totalorder %s21, 2
      %p51 = por %p49, %p50
      %p52 = scmp.ne.s32.totalorder %s41, %s42
      %p53 = scmp.eq.s32.totalorder %s21, 0
      %p54 = por %p52, %p53
      %p55 = scmp.ne.s32.totalorder %s41, %s42
      %p56 = scmp.eq.s32.totalorder %s22, 2
      %p57 = por %p55, %p56
      %p59 = scmp.ne.s32.totalorder %s42, %s58
      %p60 = scmp.eq.s32.totalorder %s22, 0
      %p61 = por %p59, %p60
      %s63 = sadd.s32 %s62, 1
      %p66 = scmp.eq.s32.totalorder %s16, 2
      %p67 = scmp.ne.s32.totalorder %s62, %s64
      %p68 = scmp.eq.s32.totalorder %s16, 0
      %p69 = por %p67, %p68
      %p70 = scmp.ne.s32.totalorder %s62, %s64
      %p71 = scmp.eq.s32.totalorder %s21, 2
      %p72 = por %p70, %p71
      %p73 = scmp.ne.s32.totalorder %s64, %s65
      %p74 = scmp.eq.s32.totalorder %s21, 0
      %p75 = por %p73, %p74
      %p76 = scmp.ne.s32.totalorder %s64, %s65
      %p77 = scmp.eq.s32.totalorder %s22, 2
      %p78 = por %p76, %p77
      %p80 = scmp.ne.s32.totalorder %s65, %s79
      %p81 = scmp.eq.s32.totalorder %s22, 0
      %p82 = por %p80, %p81
      %s84 = sadd.s32 %s83, 1
      %p87 = scmp.eq.s32.totalorder %s16, 2
      %p88 = scmp.ne.s32.totalorder %s83, %s85
      %p89 = scmp.eq.s32.totalorder %s16, 0
      %p90 = por %p88, %p89
      %p91 = scmp.ne.s32.totalorder %s83, %s85
      %p92 = scmp.eq.s32.totalorder %s21, 2
      %p93 = por %p91, %p92
      %p94 = scmp.ne.s32.totalorder %s85, %s86
      %p95 = scmp.eq.s32.totalorder %s21, 0
      %p96 = por %p94, %p95
      %p97 = scmp.ne.s32.totalorder %s85, %s86
      %p98 = scmp.eq.s32.totalorder %s22, 2
      %p99 = por %p97, %p98
      %p101 = scmp.ne.s32.totalorder %s86, %s100
      %p102 = scmp.eq.s32.totalorder %s22, 0
      %p103 = por %p101, %p102
      %s105 = sadd.s32 %s104, 1
      %p108 = scmp.eq.s32.totalorder %s16, 2
      %p109 = scmp.ne.s32.totalorder %s104, %s106
      %p110 = scmp.eq.s32.totalorder %s16, 0
      %p111 = por %p109, %p110
      %p112 = scmp.ne.s32.totalorder %s104, %s106
      %p113 = scmp.eq.s32.totalorder %s21, 2
      %p114 = por %p112, %p113
      %p115 = scmp.ne.s32.totalorder %s106, %s107
      %p116 = scmp.eq.s32.totalorder %s21, 0
      %p117 = por %p115, %p116
      %p118 = scmp.ne.s32.totalorder %s106, %s107
      %p119 = scmp.eq.s32.totalorder %s22, 2
      %p120 = por %p118, %p119
      %p122 = scmp.ne.s32.totalorder %s107, %s121
      %p123 = scmp.eq.s32.totalorder %s22, 0
      %p124 = por %p122, %p123
      %s126 = sadd.s32 %s125, 1
      %p129 = scmp.eq.s32.totalorder %s16, 2
      %p130 = scmp.ne.s32.totalorder %s125, %s127
      %p131 = scmp.eq.s32.totalorder %s16, 0
      %p132 = por %p130, %p131
      %p133 = scmp.ne.s32.totalorder %s125, %s127
      %p134 = scmp.eq.s32.totalorder %s21, 2
      %p135 = por %p133, %p134
      %p136 = scmp.ne.s32.totalorder %s127, %s128
      %p137 = scmp.eq.s32.totalorder %s21, 0
      %p138 = por %p136, %p137
      %p139 = scmp.ne.s32.totalorder %s127, %s128
      %p140 = scmp.eq.s32.totalorder %s22, 2
      %p141 = por %p139, %p140
      %p143 = scmp.ne.s32.totalorder %s128, %s142
      %p144 = scmp.eq.s32.totalorder %s22, 0
      %p145 = por %p143, %p144
      %s147 = sadd.s32 %s146, 1
      %p150 = scmp.eq.s32.totalorder %s16, 2
      %p151 = scmp.ne.s32.totalorder %s146, %s148
      %p152 = scmp.eq.s32.totalorder %s16, 0
      %p153 = por %p151, %p152
      %p154 = scmp.ne.s32.totalorder %s146, %s148
      %p155 = scmp.eq.s32.totalorder %s21, 2
      %p156 = por %p154, %p155
      %p157 = scmp.ne.s32.totalorder %s148, %s149
      %p158 = scmp.eq.s32.totalorder %s21, 0
      %p159 = por %p157, %p158
      %p160 = scmp.ne.s32.totalorder %s148, %s149
      %p161 = scmp.eq.s32.totalorder %s22, 2
      %p162 = por %p160, %p161
      %p164 = scmp.ne.s32.totalorder %s149, %s163
      %p165 = scmp.eq.s32.totalorder %s22, 0
      %p166 = por %p164, %p165
      %s168 = sadd.s32 %s167, 1
      %p171 = scmp.eq.s32.totalorder %s16, 2
      %p172 = scmp.ne.s32.totalorder %s167, %s169
      %p173 = scmp.eq.s32.totalorder %s16, 0
      %p174 = por %p172, %p173
      %p175 = scmp.ne.s32.totalorder %s167, %s169
      %p176 = scmp.eq.s32.totalorder %s21, 2
      %p177 = por %p175, %p176
      %p178 = scmp.ne.s32.totalorder %s169, %s170
      %p179 = scmp.eq.s32.totalorder %s21, 0
      %p180 = por %p178, %p179
      %p181 = scmp.ne.s32.totalorder %s169, %s170
      %p182 = scmp.eq.s32.totalorder %s22, 2
      %p183 = por %p181, %p182
      %p185 = scmp.ne.s32.totalorder %s170, %s184
      %p186 = scmp.eq.s32.totalorder %s22, 0
      %p187 = por %p185, %p186
      %s188 = ssub.s32 %s24, %s31
      %p189 = scmp.eq.s32.totalorder %s188, 0
      %s191 = sadd.s32 %s190, 1
      %s192 = scalar_select %p189, %s190, %s191
      %p195 = pneg %p189
      %p196 = scmp.eq.s32.totalorder %s16, 2
      %p197 = por %p195, %p196
      %p198 = scmp.ne.s32.totalorder %s190, %s193
      %p199 = scmp.eq.s32.totalorder %s16, 0
      %p200 = por %p198, %p199
      %p201 = scmp.ne.s32.totalorder %s190, %s193
      %p202 = scmp.eq.s32.totalorder %s21, 2
      %p203 = por %p201, %p202
      %p204 = scmp.ne.s32.totalorder %s193, %s194
      %p205 = scmp.eq.s32.totalorder %s21, 0
      %p206 = por %p204, %p205
      %p207 = scmp.ne.s32.totalorder %s193, %s194
      %p208 = scmp.eq.s32.totalorder %s22, 2
      %p209 = por %p207, %p208
      %p211 = scmp.ne.s32.totalorder %s194, %s210
      %p212 = scmp.eq.s32.totalorder %s22, 0
      %p213 = por %p211, %p212
      %p214 = scmp.le.s32.totalorder 1, %s16
      %p215 = scmp.lt.s32.totalorder %s16, 4
      %p216 = pnand %p214, %p215
      %p217 = pneg %p216
      // Predicated region
      $region9: #{tpu_custom_call.1} parent=5 // pred_check
        _
      $region10: #{tpu_custom_call.1} parent=5 // pred_check_branch
        %219 = sbr.rel (%p216) target = $region12
      $region11: #{tpu_custom_call.1} parent=5 // pred_region
        %s220 = ssub.s32 %s16, 1
        // Predicated region
        $region13: #{tpu_custom_call.1} parent=11 // pred_check
          %p221 = pneg %p54
        $region14: #{tpu_custom_call.1} parent=11 // pred_check_branch
          %223 = sbr.rel (%p221) target = $region16
        $region15: #{tpu_custom_call.1} parent=11 // pred_region
          %p224 = scmp.lt.s32.totalorder %s26, 0
          %s225 = scalar_select %p224, %s26, 0
          %s226 = smul.addr %s225, 8
          %s227 = scalar_lea.vmem %s0, %s226
        $region16: #{tpu_custom_call.1} parent=11 // pred_fallthru
          _
        // Predicated region
        $region17: #{tpu_custom_call.1} parent=11 // pred_check
          %p228 = pneg %p75
        $region18: #{tpu_custom_call.1} parent=11 // pred_check_branch
          %230 = sbr.rel (%p228) target = $region20
        $region19: #{tpu_custom_call.1} parent=11 // pred_region
          _
        $region20: #{tpu_custom_call.1} parent=11 // pred_fallthru
          _
        // Predicated region
        $region21: #{tpu_custom_call.1} parent=11 // pred_check
          %p231 = pneg %p96
        $region22: #{tpu_custom_call.1} parent=11 // pred_check_branch
          %233 = sbr.rel (%p231) target = $region24
        $region23: #{tpu_custom_call.1} parent=11 // pred_region
          _
        $region24: #{tpu_custom_call.1} parent=11 // pred_fallthru
          _
        // Predicated region
        $region25: #{tpu_custom_call.1} parent=11 // pred_check
          %p234 = pneg %p117
        $region26: #{tpu_custom_call.1} parent=11 // pred_check_branch
          %236 = sbr.rel (%p234) target = $region28
        $region27: #{tpu_custom_call.1} parent=11 // pred_region
          _
        $region28: #{tpu_custom_call.1} parent=11 // pred_fallthru
          _
        // Predicated region
        $region29: #{tpu_custom_call.1} parent=11 // pred_check
          %p237 = pneg %p138
        $region30: #{tpu_custom_call.1} parent=11 // pred_check_branch
          %239 = sbr.rel (%p237) target = $region32
        $region31: #{tpu_custom_call.1} parent=11 // pred_region
          _
        $region32: #{tpu_custom_call.1} parent=11 // pred_fallthru
          _
        // Predicated region
        $region33: #{tpu_custom_call.1} parent=11 // pred_check
          %p240 = pneg %p159
        $region34: #{tpu_custom_call.1} parent=11 // pred_check_branch
          %242 = sbr.rel (%p240) target = $region36
        $region35: #{tpu_custom_call.1} parent=11 // pred_region
          _
        $region36: #{tpu_custom_call.1} parent=11 // pred_fallthru
          _
        // Predicated region
        $region37: #{tpu_custom_call.1} parent=11 // pred_check
          %p243 = pneg %p180
        $region38: #{tpu_custom_call.1} parent=11 // pred_check_branch
          %245 = sbr.rel (%p243) target = $region40
        $region39: #{tpu_custom_call.1} parent=11 // pred_region
          _
        $region40: #{tpu_custom_call.1} parent=11 // pred_fallthru
          _
      $region12: #{tpu_custom_call.1} parent=5 // pred_fallthru
        _
      %p246 = scmp.lt.s32.totalorder %s16, 3
      // Predicated region
      $region41: #{tpu_custom_call.1} parent=5 // pred_check
        %p247 = pneg %p246
      $region42: #{tpu_custom_call.1} parent=5 // pred_check_branch
        %249 = sbr.rel (%p247) target = $region44
      $region43: #{tpu_custom_call.1} parent=5 // pred_region
        _
      $region44: #{tpu_custom_call.1} parent=5 // pred_fallthru
        _
      %p250 = scmp.le.s32.totalorder 1, %s16
      %p251 = scmp.lt.s32.totalorder %s16, 4
      %p252 = pnand %p250, %p251
      %p253 = pneg %p252
      // Predicated region
      $region45: #{tpu_custom_call.1} parent=5 // pred_check
        _
      $region46: #{tpu_custom_call.1} parent=5 // pred_check_branch
        %255 = sbr.rel (%p252) target = $region48
      $region47: #{tpu_custom_call.1} parent=5 // pred_region
        %s256 = ssub.s32 %s16, 1
        %p257 = scmp.lt.s32.totalorder %s26, 0
        %s258 = scalar_select %p257, %s26, 0
        %s259 = smul.addr %s258, 8
        %s260 = scalar_lea.vmem %s0, %s259
        %p261 = pneg %p54
        %p262 = pneg %p51
        %p263 = pneg %p75
        %p264 = pneg %p72
        %p265 = pneg %p96
        %p266 = pneg %p93
        %p267 = pneg %p117
        %p268 = pneg %p114
        %p269 = pneg %p138
        %p270 = pneg %p135
        %p271 = pneg %p159
        %p272 = pneg %p156
        %p273 = pneg %p180
        %p274 = pneg %p177
        %p275 = pneg %p206
        %p276 = pneg %p203
        %p277 = scmp.lt.s32.totalorder %s26, 0
        %s278 = scalar_select %p277, %s26, 0
        %s279 = smul.addr %s278, 8
        %s280 = scalar_lea.vmem %s0, %s279
        %p281 = scmp.lt.s32.totalorder %s25, 2
        // Predicated region
        $region49: #{tpu_custom_call.1} parent=47 // pred_check
          %p282 = pneg %p281
        $region50: #{tpu_custom_call.1} parent=47 // pred_check_branch
          %284 = sbr.rel (%p282) target = $region52
        $region51: #{tpu_custom_call.1} parent=47 // pred_region
          %285 = vst [vmem:[#allocation7] sm:$0x1] 0.0
        $region52: #{tpu_custom_call.1} parent=47 // pred_fallthru
          _
        %p286 = scmp.eq.s32.totalorder %s25, 0
        // Predicated region
        $region53: #{tpu_custom_call.1} parent=47 // pred_check
          %p287 = pneg %p286
        $region54: #{tpu_custom_call.1} parent=47 // pred_check_branch
          %289 = sbr.rel (%p287) target = $region56
        $region55: #{tpu_custom_call.1} parent=47 // pred_region
          %v290 = vld [vmem:[%s1] sm:$0xff]
          %v291 = vld [vmem:[%s1 + $0x8] sm:$0xff]
          %v292 = vld [vmem:[%s1 + $0x10] sm:$0xff]
          %v293 = vld [vmem:[%s1 + $0x18] sm:$0xff]
          %v294 = vld [vmem:[%s1 + $0x20] sm:$0xff]
          %v295 = vld [vmem:[%s1 + $0x28] sm:$0xff]
          %v296 = vld [vmem:[%s1 + $0x30] sm:$0xff]
          %v297 = vld [vmem:[%s1 + $0x38] sm:$0xff]
          %v298 = vld [vmem:[%s280] sm:$0xff]
          %v299 = vld [vmem:[%s3] sm:$0xff]
          %v300 = vld [vmem:[%s3 + $0x8] sm:$0xff]
          %v301 = vld [vmem:[%s3 + $0x10] sm:$0xff]
          %v302 = vld [vmem:[%s3 + $0x18] sm:$0xff]
          %v303 = vld [vmem:[%s3 + $0x20] sm:$0xff]
          %v304 = vld [vmem:[%s3 + $0x28] sm:$0xff]
          %v305 = vld [vmem:[%s3 + $0x30] sm:$0xff]
          %v306 = vld [vmem:[%s3 + $0x38] sm:$0xff]
          %308 = vset.pattern.permute.xlu0 0
          %309 = vperm.xlu0 %308, %v299
          %v310 = vpop.permute.xlu0 %309
          %313 = vset.pattern.permute.xlu0 0
          %314 = vperm.xlu0 %313, %v300
          %v315 = vpop.permute.xlu0 %314
          %318 = vset.pattern.permute.xlu0 0
          %319 = vperm.xlu0 %318, %v301
          %v320 = vpop.permute.xlu0 %319
          %323 = vset.pattern.permute.xlu0 0
          %324 = vperm.xlu0 %323, %v302
          %v325 = vpop.permute.xlu0 %324
          %328 = vset.pattern.permute.xlu0 0
          %329 = vperm.xlu0 %328, %v303
          %v330 = vpop.permute.xlu0 %329
          %333 = vset.pattern.permute.xlu0 0
          %334 = vperm.xlu0 %333, %v304
          %v335 = vpop.permute.xlu0 %334
          %338 = vset.pattern.permute.xlu0 0
          %339 = vperm.xlu0 %338, %v305
          %v340 = vpop.permute.xlu0 %339
          %343 = vset.pattern.permute.xlu0 0
          %344 = vperm.xlu0 %343, %v306
          %v345 = vpop.permute.xlu0 %344
          %vm347 = vcmask 64512
          %v349 = vsel %vm347, %v290, 0
          %v352 = vsel %vm347, %v291, 0
          %v355 = vsel %vm347, %v292, 0
          %v358 = vsel %vm347, %v293, 0
          %v361 = vsel %vm347, %v294, 0
          %v364 = vsel %vm347, %v295, 0
          %v367 = vsel %vm347, %v296, 0
          %v370 = vsel %vm347, %v297, 0
          %372 = vmatpush.msra.mxu0 0.0
          %373 = vmatpush.msra.mxu0 0.0
          %374 = vmatpush.msra.mxu0 0.0
          %375 = vmatpush.msra.mxu0 0.0
          %376 = vmatpush.msra.mxu0 0.0
          %377 = vmatpush.msra.mxu0 0.0
          %378 = vmatpush.msra.mxu0 0.0
          %379 = vmatpush.msra.mxu0 0.0
          %380 = vmatpush.msra.mxu0 0.0
          %381 = vmatpush.msra.mxu0 0.0
          %382 = vmatpush.msra.mxu0 0.0
          %383 = vmatpush.msra.mxu0 0.0
          %384 = vmatpush.msra.mxu0 0.0
          %385 = vmatpush.msra.mxu0 0.0
          %386 = vmatpush.msra.mxu0 0.0
          %387 = vmatpush.msra.mxu0 %v298
          %388 = vmatmul.f32.gmra.mxu0 %v349
          %v389 = vpop.f32.mrf.mxu0
          %v390 = vadd.f32 %v310, %v389
          %391 = vmatmul.f32.gmra.mxu0 %v352
          %v392 = vpop.f32.mrf.mxu0
          %v393 = vadd.f32 %v315, %v392
          %394 = vmatmul.f32.gmra.mxu0 %v355
          %v395 = vpop.f32.mrf.mxu0
          %v396 = vadd.f32 %v320, %v395
          %397 = vmatmul.f32.gmra.mxu0 %v358
          %v398 = vpop.f32.mrf.mxu0
          %v399 = vadd.f32 %v325, %v398
          %400 = vmatmul.f32.gmra.mxu0 %v361
          %v401 = vpop.f32.mrf.mxu0
          %v402 = vadd.f32 %v330, %v401
          %403 = vmatmul.f32.gmra.mxu0 %v364
          %v404 = vpop.f32.mrf.mxu0
          %v405 = vadd.f32 %v335, %v404
          %406 = vmatmul.f32.gmra.mxu0 %v367
          %v407 = vpop.f32.mrf.mxu0
          %v408 = vadd.f32 %v340, %v407
          %409 = vmatmul.f32.gmra.mxu0 %v370
          %v410 = vpop.f32.mrf.mxu0
          %v411 = vadd.f32 %v345, %v410
          %412 = vdwg.mxu0
          %v413 = vmax.f32 %v390, 0.0
          %v414 = vmax.f32 %v393, 0.0
          %v415 = vmax.f32 %v396, 0.0
          %v416 = vmax.f32 %v399, 0.0
          %v417 = vmax.f32 %v402, 0.0
          %v418 = vmax.f32 %v405, 0.0
          %v419 = vmax.f32 %v408, 0.0
          %v420 = vmax.f32 %v411, 0.0
          %v421 = vlaneseq
          %v422 = vand.u32 %v421, 127
          %s423 = smul.u32 %s26, 128
          %v424 = vstv %s423
          %v425 = vadd.s32 %v422, %v424
          %vm426 = vcmp.lt.s32.totalorder %v425, 8
          %v427 = vsel %vm426, 1, 0
          %v428 = vcvt.s32.f32 %v427
          %v429 = vmul.f32 %v413, %v428
          %v430 = vmul.f32 %v414, %v428
          %v431 = vmul.f32 %v415, %v428
          %v432 = vmul.f32 %v416, %v428
          %v433 = vmul.f32 %v417, %v428
          %v434 = vmul.f32 %v418, %v428
          %v435 = vmul.f32 %v419, %v428
          %v436 = vmul.f32 %v420, %v428
          %437 = vadd.xlane.f32.xlu0 %v429
          %v438 = vpop.xlane.xlu0 %437
          %439 = vadd.xlane.f32.xlu0 %v430
          %v440 = vpop.xlane.xlu0 %439
          %441 = vadd.xlane.f32.xlu0 %v431
          %v442 = vpop.xlane.xlu0 %441
          %443 = vadd.xlane.f32.xlu0 %v432
          %v444 = vpop.xlane.xlu0 %443
          %445 = vadd.xlane.f32.xlu0 %v433
          %v446 = vpop.xlane.xlu0 %445
          %447 = vadd.xlane.f32.xlu0 %v434
          %v448 = vpop.xlane.xlu0 %447
          %449 = vadd.xlane.f32.xlu0 %v435
          %v450 = vpop.xlane.xlu0 %449
          %451 = vadd.xlane.f32.xlu0 %v436
          %v452 = vpop.xlane.xlu0 %451
          %v453 = vmul.f32 %v429, %v429
          %v454 = vmul.f32 %v430, %v430
          %v455 = vmul.f32 %v431, %v431
          %v456 = vmul.f32 %v432, %v432
          %v457 = vmul.f32 %v433, %v433
          %v458 = vmul.f32 %v434, %v434
          %v459 = vmul.f32 %v435, %v435
          %v460 = vmul.f32 %v436, %v436
          %461 = vadd.xlane.f32.xlu0 %v453
          %v462 = vpop.xlane.xlu0 %461
          %463 = vadd.xlane.f32.xlu0 %v454
          %v464 = vpop.xlane.xlu0 %463
          %465 = vadd.xlane.f32.xlu0 %v455
          %v466 = vpop.xlane.xlu0 %465
          %467 = vadd.xlane.f32.xlu0 %v456
          %v468 = vpop.xlane.xlu0 %467
          %469 = vadd.xlane.f32.xlu0 %v457
          %v470 = vpop.xlane.xlu0 %469
          %471 = vadd.xlane.f32.xlu0 %v458
          %v472 = vpop.xlane.xlu0 %471
          %473 = vadd.xlane.f32.xlu0 %v459
          %v474 = vpop.xlane.xlu0 %473
          %475 = vadd.xlane.f32.xlu0 %v460
          %v476 = vpop.xlane.xlu0 %475
          %p477 = scmp.eq.s32.totalorder %s26, 0
          // Predicated region
          $region57: #{tpu_custom_call.1} parent=55 // pred_check
            %p478 = pneg %p477
          $region58: #{tpu_custom_call.1} parent=55 // pred_check_branch
            %480 = sbr.rel (%p478) target = $region60
          $region59: #{tpu_custom_call.1} parent=55 // pred_region
            %vm481 = vcmask 7168
            %482 = vst.msk [vmem:[#allocation2] sm:$0xff] %vm481, %v438
            %483 = vst.msk [vmem:[#allocation2 + $0x8] sm:$0xff] %vm481, %v440
            %484 = vst.msk [vmem:[#allocation2 + $0x10] sm:$0xff] %vm481, %v442
            %485 = vst.msk [vmem:[#allocation2 + $0x18] sm:$0xff] %vm481, %v444
            %486 = vst.msk [vmem:[#allocation2 + $0x20] sm:$0xff] %vm481, %v446
            %487 = vst.msk [vmem:[#allocation2 + $0x28] sm:$0xff] %vm481, %v448
            %488 = vst.msk [vmem:[#allocation2 + $0x30] sm:$0xff] %vm481, %v450
            %489 = vst.msk [vmem:[#allocation2 + $0x38] sm:$0xff] %vm481, %v452
            %490 = vst.msk [vmem:[#allocation3] sm:$0xff] %vm481, %v462
            %491 = vst.msk [vmem:[#allocation3 + $0x8] sm:$0xff] %vm481, %v464
            %492 = vst.msk [vmem:[#allocation3 + $0x10] sm:$0xff] %vm481, %v466
            %493 = vst.msk [vmem:[#allocation3 + $0x18] sm:$0xff] %vm481, %v468
            %494 = vst.msk [vmem:[#allocation3 + $0x20] sm:$0xff] %vm481, %v470
            %495 = vst.msk [vmem:[#allocation3 + $0x28] sm:$0xff] %vm481, %v472
            %496 = vst.msk [vmem:[#allocation3 + $0x30] sm:$0xff] %vm481, %v474
            %497 = vst.msk [vmem:[#allocation3 + $0x38] sm:$0xff] %vm481, %v476
          $region60: #{tpu_custom_call.1} parent=55 // pred_fallthru
            _
          %p498 = scmp.gt.s32.totalorder %s26, 0
          // Predicated region
          $region61: #{tpu_custom_call.1} parent=55 // pred_check
            %p499 = pneg %p498
          $region62: #{tpu_custom_call.1} parent=55 // pred_check_branch
            %501 = sbr.rel (%p499) target = $region64
          $region63: #{tpu_custom_call.1} parent=55 // pred_region
            %v502 = vld [vmem:[#allocation2] sm:$0xff]
            %v503 = vld [vmem:[#allocation2 + $0x8] sm:$0xff]
            %v504 = vld [vmem:[#allocation2 + $0x10] sm:$0xff]
            %v505 = vld [vmem:[#allocation2 + $0x18] sm:$0xff]
            %v506 = vld [vmem:[#allocation2 + $0x20] sm:$0xff]
            %v507 = vld [vmem:[#allocation2 + $0x28] sm:$0xff]
            %v508 = vld [vmem:[#allocation2 + $0x30] sm:$0xff]
            %v509 = vld [vmem:[#allocation2 + $0x38] sm:$0xff]
            %v510 = vadd.f32 %v502, %v438
            %v511 = vadd.f32 %v503, %v440
            %v512 = vadd.f32 %v504, %v442
            %v513 = vadd.f32 %v505, %v444
            %v514 = vadd.f32 %v506, %v446
            %v515 = vadd.f32 %v507, %v448
            %v516 = vadd.f32 %v508, %v450
            %v517 = vadd.f32 %v509, %v452
            %vm518 = vcmask 7168
            %519 = vst.msk [vmem:[#allocation2] sm:$0xff] %vm518, %v510
            %520 = vst.msk [vmem:[#allocation2 + $0x8] sm:$0xff] %vm518, %v511
            %521 = vst.msk [vmem:[#allocation2 + $0x10] sm:$0xff] %vm518, %v512
            %522 = vst.msk [vmem:[#allocation2 + $0x18] sm:$0xff] %vm518, %v513
            %523 = vst.msk [vmem:[#allocation2 + $0x20] sm:$0xff] %vm518, %v514
            %524 = vst.msk [vmem:[#allocation2 + $0x28] sm:$0xff] %vm518, %v515
            %525 = vst.msk [vmem:[#allocation2 + $0x30] sm:$0xff] %vm518, %v516
            %526 = vst.msk [vmem:[#allocation2 + $0x38] sm:$0xff] %vm518, %v517
            %v527 = vld [vmem:[#allocation3] sm:$0xff]
            %v528 = vld [vmem:[#allocation3 + $0x8] sm:$0xff]
            %v529 = vld [vmem:[#allocation3 + $0x10] sm:$0xff]
            %v530 = vld [vmem:[#allocation3 + $0x18] sm:$0xff]
            %v531 = vld [vmem:[#allocation3 + $0x20] sm:$0xff]
            %v532 = vld [vmem:[#allocation3 + $0x28] sm:$0xff]
            %v533 = vld [vmem:[#allocation3 + $0x30] sm:$0xff]
            %v534 = vld [vmem:[#allocation3 + $0x38] sm:$0xff]
            %v535 = vadd.f32 %v527, %v462
            %v536 = vadd.f32 %v528, %v464
            %v537 = vadd.f32 %v529, %v466
            %v538 = vadd.f32 %v530, %v468
            %v539 = vadd.f32 %v531, %v470
            %v540 = vadd.f32 %v532, %v472
            %v541 = vadd.f32 %v533, %v474
            %v542 = vadd.f32 %v534, %v476
            %543 = vst.msk [vmem:[#allocation3] sm:$0xff] %vm518, %v535
            %544 = vst.msk [vmem:[#allocation3 + $0x8] sm:$0xff] %vm518, %v536
            %545 = vst.msk [vmem:[#allocation3 + $0x10] sm:$0xff] %vm518, %v537
            %546 = vst.msk [vmem:[#allocation3 + $0x18] sm:$0xff] %vm518, %v538
            %547 = vst.msk [vmem:[#allocation3 + $0x20] sm:$0xff] %vm518, %v539
            %548 = vst.msk [vmem:[#allocation3 + $0x28] sm:$0xff] %vm518, %v540
            %549 = vst.msk [vmem:[#allocation3 + $0x30] sm:$0xff] %vm518, %v541
            %550 = vst.msk [vmem:[#allocation3 + $0x38] sm:$0xff] %vm518, %v542
          $region64: #{tpu_custom_call.1} parent=55 // pred_fallthru
            _
          // Predicated region
          $region65: #{tpu_custom_call.1} parent=55 // pred_check
            %p551 = pneg %p477
          $region66: #{tpu_custom_call.1} parent=55 // pred_check_branch
            %553 = sbr.rel (%p551) target = $region68
          $region67: #{tpu_custom_call.1} parent=55 // pred_region
            %v554 = vld [vmem:[#allocation2] sm:$0xff]
            %v555 = vld [vmem:[#allocation2 + $0x8] sm:$0xff]
            %v556 = vld [vmem:[#allocation2 + $0x10] sm:$0xff]
            %v557 = vld [vmem:[#allocation2 + $0x18] sm:$0xff]
            %v558 = vld [vmem:[#allocation2 + $0x20] sm:$0xff]
            %v559 = vld [vmem:[#allocation2 + $0x28] sm:$0xff]
            %v560 = vld [vmem:[#allocation2 + $0x30] sm:$0xff]
            %v561 = vld [vmem:[#allocation2 + $0x38] sm:$0xff]
            %v562 = vmul.f32 %v554, 0.125
            %v563 = vmul.f32 %v555, 0.125
            %v564 = vmul.f32 %v556, 0.125
            %v565 = vmul.f32 %v557, 0.125
            %v566 = vmul.f32 %v558, 0.125
            %v567 = vmul.f32 %v559, 0.125
            %v568 = vmul.f32 %v560, 0.125
            %v569 = vmul.f32 %v561, 0.125
            %v570 = vld [vmem:[#allocation3] sm:$0xff]
            %v571 = vld [vmem:[#allocation3 + $0x8] sm:$0xff]
            %v572 = vld [vmem:[#allocation3 + $0x10] sm:$0xff]
            %v573 = vld [vmem:[#allocation3 + $0x18] sm:$0xff]
            %v574 = vld [vmem:[#allocation3 + $0x20] sm:$0xff]
            %v575 = vld [vmem:[#allocation3 + $0x28] sm:$0xff]
            %v576 = vld [vmem:[#allocation3 + $0x30] sm:$0xff]
            %v577 = vld [vmem:[#allocation3 + $0x38] sm:$0xff]
            %v578 = vmul.f32 %v570, 0.125
            %v579 = vmul.f32 %v571, 0.125
            %v580 = vmul.f32 %v572, 0.125
            %v581 = vmul.f32 %v573, 0.125
            %v582 = vmul.f32 %v574, 0.125
            %v583 = vmul.f32 %v575, 0.125
            %v584 = vmul.f32 %v576, 0.125
            %v585 = vmul.f32 %v577, 0.125
            %v586 = vmul.f32 %v562, %v562
            %v587 = vmul.f32 %v563, %v563
            %v588 = vmul.f32 %v564, %v564
            %v589 = vmul.f32 %v565, %v565
            %v590 = vmul.f32 %v566, %v566
            %v591 = vmul.f32 %v567, %v567
            %v592 = vmul.f32 %v568, %v568
            %v593 = vmul.f32 %v569, %v569
            %v594 = vsub.f32 %v578, %v586
            %v595 = vsub.f32 %v579, %v587
            %v596 = vsub.f32 %v580, %v588
            %v597 = vsub.f32 %v581, %v589
            %v598 = vsub.f32 %v582, %v590
            %v599 = vsub.f32 %v583, %v591
            %v600 = vsub.f32 %v584, %v592
            %v601 = vsub.f32 %v585, %v593
            %vm602 = vcmask 7168
            %603 = vst.msk [vmem:[#allocation2] sm:$0xff] %vm602, %v562
            %604 = vst.msk [vmem:[#allocation2 + $0x8] sm:$0xff] %vm602, %v563
            %605 = vst.msk [vmem:[#allocation2 + $0x10] sm:$0xff] %vm602, %v564
            %606 = vst.msk [vmem:[#allocation2 + $0x18] sm:$0xff] %vm602, %v565
            %607 = vst.msk [vmem:[#allocation2 + $0x20] sm:$0xff] %vm602, %v566
            %608 = vst.msk [vmem:[#allocation2 + $0x28] sm:$0xff] %vm602, %v567
            %609 = vst.msk [vmem:[#allocation2 + $0x30] sm:$0xff] %vm602, %v568
            %610 = vst.msk [vmem:[#allocation2 + $0x38] sm:$0xff] %vm602, %v569
            %v611 = vadd.f32 %v594, 1e-05
            %v612 = vadd.f32 %v595, 1e-05
            %v613 = vadd.f32 %v596, 1e-05
            %v614 = vadd.f32 %v597, 1e-05
            %v615 = vadd.f32 %v598, 1e-05
            %v616 = vadd.f32 %v599, 1e-05
            %v617 = vadd.f32 %v600, 1e-05
            %v618 = vadd.f32 %v601, 1e-05
            %v619 = vrsqrt.pop %v611
            %v620 = vmul.f32 %v619, %v611
            %v621 = vmul.f32 %v620, %v619
            %v622 = vmul.f32 0.5, %v621
            %v623 = vsub.f32 1.5, %v622
            %v624 = vmul.f32 %v619, %v623
            %vm625 = vweird.f32 %v611
            %vm626 = vweird.f32 %v619
            %vm627 = vmor %vm625, %vm626
            %v628 = vsel %vm627, %v619, %v624
            %v629 = vrsqrt.pop %v612
            %v630 = vmul.f32 %v629, %v612
            %v631 = vmul.f32 %v630, %v629
            %v632 = vmul.f32 0.5, %v631
            %v633 = vsub.f32 1.5, %v632
            %v634 = vmul.f32 %v629, %v633
            %vm635 = vweird.f32 %v612
            %vm636 = vweird.f32 %v629
            %vm637 = vmor %vm635, %vm636
            %v638 = vsel %vm637, %v629, %v634
            %v639 = vrsqrt.pop %v613
            %v640 = vmul.f32 %v639, %v613
            %v641 = vmul.f32 %v640, %v639
            %v642 = vmul.f32 0.5, %v641
            %v643 = vsub.f32 1.5, %v642
            %v644 = vmul.f32 %v639, %v643
            %vm645 = vweird.f32 %v613
            %vm646 = vweird.f32 %v639
            %vm647 = vmor %vm645, %vm646
            %v648 = vsel %vm647, %v639, %v644
            %v649 = vrsqrt.pop %v614
            %v650 = vmul.f32 %v649, %v614
            %v651 = vmul.f32 %v650, %v649
            %v652 = vmul.f32 0.5, %v651
            %v653 = vsub.f32 1.5, %v652
            %v654 = vmul.f32 %v649, %v653
            %vm655 = vweird.f32 %v614
            %vm656 = vweird.f32 %v649
            %vm657 = vmor %vm655, %vm656
            %v658 = vsel %vm657, %v649, %v654
            %v659 = vrsqrt.pop %v615
            %v660 = vmul.f32 %v659, %v615
            %v661 = vmul.f32 %v660, %v659
            %v662 = vmul.f32 0.5, %v661
            %v663 = vsub.f32 1.5, %v662
            %v664 = vmul.f32 %v659, %v663
            %vm665 = vweird.f32 %v615
            %vm666 = vweird.f32 %v659
            %vm667 = vmor %vm665, %vm666
            %v668 = vsel %vm667, %v659, %v664
            %v669 = vrsqrt.pop %v616
            %v670 = vmul.f32 %v669, %v616
            %v671 = vmul.f32 %v670, %v669
            %v672 = vmul.f32 0.5, %v671
            %v673 = vsub.f32 1.5, %v672
            %v674 = vmul.f32 %v669, %v673
            %vm675 = vweird.f32 %v616
            %vm676 = vweird.f32 %v669
            %vm677 = vmor %vm675, %vm676
            %v678 = vsel %vm677, %v669, %v674
            %v679 = vrsqrt.pop %v617
            %v680 = vmul.f32 %v679, %v617
            %v681 = vmul.f32 %v680, %v679
            %v682 = vmul.f32 0.5, %v681
            %v683 = vsub.f32 1.5, %v682
            %v684 = vmul.f32 %v679, %v683
            %vm685 = vweird.f32 %v617
            %vm686 = vweird.f32 %v679
            %vm687 = vmor %vm685, %vm686
            %v688 = vsel %vm687, %v679, %v684
            %v689 = vrsqrt.pop %v618
            %v690 = vmul.f32 %v689, %v618
            %v691 = vmul.f32 %v690, %v689
            %v692 = vmul.f32 0.5, %v691
            %v693 = vsub.f32 1.5, %v692
            %v694 = vmul.f32 %v689, %v693
            %vm695 = vweird.f32 %v618
            %vm696 = vweird.f32 %v689
            %vm697 = vmor %vm695, %vm696
            %v698 = vsel %vm697, %v689, %v694
            %699 = vst.msk [vmem:[#allocation3] sm:$0xff] %vm602, %v628
            %700 = vst.msk [vmem:[#allocation3 + $0x8] sm:$0xff] %vm602, %v638
            %701 = vst.msk [vmem:[#allocation3 + $0x10] sm:$0xff] %vm602, %v648
            %702 = vst.msk [vmem:[#allocation3 + $0x18] sm:$0xff] %vm602, %v658
            %703 = vst.msk [vmem:[#allocation3 + $0x20] sm:$0xff] %vm602, %v668
            %704 = vst.msk [vmem:[#allocation3 + $0x28] sm:$0xff] %vm602, %v678
            %705 = vst.msk [vmem:[#allocation3 + $0x30] sm:$0xff] %vm602, %v688
            %706 = vst.msk [vmem:[#allocation3 + $0x38] sm:$0xff] %vm602, %v698
          $region68: #{tpu_custom_call.1} parent=55 // pred_fallthru
            _
        $region56: #{tpu_custom_call.1} parent=47 // pred_fallthru
          _
        %p707 = scmp.eq.s32.totalorder %s25, 1
        // Predicated region
        $region69: #{tpu_custom_call.1} parent=47 // pred_check
          %p708 = pneg %p707
        $region70: #{tpu_custom_call.1} parent=47 // pred_check_branch
          %710 = sbr.rel (%p708) target = $region72
        $region71: #{tpu_custom_call.1} parent=47 // pred_region
          %v711 = vld [vmem:[%s1] sm:$0xff]
          %v712 = vld [vmem:[%s1 + $0x8] sm:$0xff]
          %v713 = vld [vmem:[%s1 + $0x10] sm:$0xff]
          %v714 = vld [vmem:[%s1 + $0x18] sm:$0xff]
          %v715 = vld [vmem:[%s1 + $0x20] sm:$0xff]
          %v716 = vld [vmem:[%s1 + $0x28] sm:$0xff]
          %v717 = vld [vmem:[%s1 + $0x30] sm:$0xff]
          %v718 = vld [vmem:[%s1 + $0x38] sm:$0xff]
          %v719 = vld [vmem:[%s280] sm:$0xff]
          %v720 = vld [vmem:[%s3] sm:$0xff]
          %v721 = vld [vmem:[%s3 + $0x8] sm:$0xff]
          %v722 = vld [vmem:[%s3 + $0x10] sm:$0xff]
          %v723 = vld [vmem:[%s3 + $0x18] sm:$0xff]
          %v724 = vld [vmem:[%s3 + $0x20] sm:$0xff]
          %v725 = vld [vmem:[%s3 + $0x28] sm:$0xff]
          %v726 = vld [vmem:[%s3 + $0x30] sm:$0xff]
          %v727 = vld [vmem:[%s3 + $0x38] sm:$0xff]
          %729 = vset.pattern.permute.xlu0 0
          %730 = vperm.xlu0 %729, %v720
          %v731 = vpop.permute.xlu0 %730
          %734 = vset.pattern.permute.xlu0 0
          %735 = vperm.xlu0 %734, %v721
          %v736 = vpop.permute.xlu0 %735
          %739 = vset.pattern.permute.xlu0 0
          %740 = vperm.xlu0 %739, %v722
          %v741 = vpop.permute.xlu0 %740
          %744 = vset.pattern.permute.xlu0 0
          %745 = vperm.xlu0 %744, %v723
          %v746 = vpop.permute.xlu0 %745
          %749 = vset.pattern.permute.xlu0 0
          %750 = vperm.xlu0 %749, %v724
          %v751 = vpop.permute.xlu0 %750
          %754 = vset.pattern.permute.xlu0 0
          %755 = vperm.xlu0 %754, %v725
          %v756 = vpop.permute.xlu0 %755
          %759 = vset.pattern.permute.xlu0 0
          %760 = vperm.xlu0 %759, %v726
          %v761 = vpop.permute.xlu0 %760
          %764 = vset.pattern.permute.xlu0 0
          %765 = vperm.xlu0 %764, %v727
          %v766 = vpop.permute.xlu0 %765
          %vm768 = vcmask 64512
          %v770 = vsel %vm768, %v711, 0
          %v773 = vsel %vm768, %v712, 0
          %v776 = vsel %vm768, %v713, 0
          %v779 = vsel %vm768, %v714, 0
          %v782 = vsel %vm768, %v715, 0
          %v785 = vsel %vm768, %v716, 0
          %v788 = vsel %vm768, %v717, 0
          %v791 = vsel %vm768, %v718, 0
          %793 = vmatpush.msra.mxu0 0.0
          %794 = vmatpush.msra.mxu0 0.0
          %795 = vmatpush.msra.mxu0 0.0
          %796 = vmatpush.msra.mxu0 0.0
          %797 = vmatpush.msra.mxu0 0.0
          %798 = vmatpush.msra.mxu0 0.0
          %799 = vmatpush.msra.mxu0 0.0
          %800 = vmatpush.msra.mxu0 0.0
          %801 = vmatpush.msra.mxu0 0.0
          %802 = vmatpush.msra.mxu0 0.0
          %803 = vmatpush.msra.mxu0 0.0
          %804 = vmatpush.msra.mxu0 0.0
          %805 = vmatpush.msra.mxu0 0.0
          %806 = vmatpush.msra.mxu0 0.0
          %807 = vmatpush.msra.mxu0 0.0
          %808 = vmatpush.msra.mxu0 %v719
          %809 = vmatmul.f32.gmra.mxu0 %v770
          %v810 = vpop.f32.mrf.mxu0
          %v811 = vadd.f32 %v731, %v810
          %812 = vmatmul.f32.gmra.mxu0 %v773
          %v813 = vpop.f32.mrf.mxu0
          %v814 = vadd.f32 %v736, %v813
          %815 = vmatmul.f32.gmra.mxu0 %v776
          %v816 = vpop.f32.mrf.mxu0
          %v817 = vadd.f32 %v741, %v816
          %818 = vmatmul.f32.gmra.mxu0 %v779
          %v819 = vpop.f32.mrf.mxu0
          %v820 = vadd.f32 %v746, %v819
          %821 = vmatmul.f32.gmra.mxu0 %v782
          %v822 = vpop.f32.mrf.mxu0
          %v823 = vadd.f32 %v751, %v822
          %824 = vmatmul.f32.gmra.mxu0 %v785
          %v825 = vpop.f32.mrf.mxu0
          %v826 = vadd.f32 %v756, %v825
          %827 = vmatmul.f32.gmra.mxu0 %v788
          %v828 = vpop.f32.mrf.mxu0
          %v829 = vadd.f32 %v761, %v828
          %830 = vmatmul.f32.gmra.mxu0 %v791
          %v831 = vpop.f32.mrf.mxu0
          %v832 = vadd.f32 %v766, %v831
          %833 = vdwg.mxu0
          %v834 = vmax.f32 %v811, 0.0
          %v835 = vmax.f32 %v814, 0.0
          %v836 = vmax.f32 %v817, 0.0
          %v837 = vmax.f32 %v820, 0.0
          %v838 = vmax.f32 %v823, 0.0
          %v839 = vmax.f32 %v826, 0.0
          %v840 = vmax.f32 %v829, 0.0
          %v841 = vmax.f32 %v832, 0.0
          %v842 = vld [vmem:[#allocation2] sm:$0xff]
          %v843 = vld [vmem:[#allocation2 + $0x8] sm:$0xff]
          %v844 = vld [vmem:[#allocation2 + $0x10] sm:$0xff]
          %v845 = vld [vmem:[#allocation2 + $0x18] sm:$0xff]
          %v846 = vld [vmem:[#allocation2 + $0x20] sm:$0xff]
          %v847 = vld [vmem:[#allocation2 + $0x28] sm:$0xff]
          %v848 = vld [vmem:[#allocation2 + $0x30] sm:$0xff]
          %v849 = vld [vmem:[#allocation2 + $0x38] sm:$0xff]
          %851 = vset.pattern.permute.xlu0 0
          %852 = vperm.xlu0 %851, %v842
          %v853 = vpop.permute.xlu0 %852
          %856 = vset.pattern.permute.xlu0 0
          %857 = vperm.xlu0 %856, %v843
          %v858 = vpop.permute.xlu0 %857
          %861 = vset.pattern.permute.xlu0 0
          %862 = vperm.xlu0 %861, %v844
          %v863 = vpop.permute.xlu0 %862
          %866 = vset.pattern.permute.xlu0 0
          %867 = vperm.xlu0 %866, %v845
          %v868 = vpop.permute.xlu0 %867
          %871 = vset.pattern.permute.xlu0 0
          %872 = vperm.xlu0 %871, %v846
          %v873 = vpop.permute.xlu0 %872
          %876 = vset.pattern.permute.xlu0 0
          %877 = vperm.xlu0 %876, %v847
          %v878 = vpop.permute.xlu0 %877
          %881 = vset.pattern.permute.xlu0 0
          %882 = vperm.xlu0 %881, %v848
          %v883 = vpop.permute.xlu0 %882
          %886 = vset.pattern.permute.xlu0 0
          %887 = vperm.xlu0 %886, %v849
          %v888 = vpop.permute.xlu0 %887
          %v890 = vsub.f32 %v834, %v853
          %v891 = vsub.f32 %v835, %v858
          %v892 = vsub.f32 %v836, %v863
          %v893 = vsub.f32 %v837, %v868
          %v894 = vsub.f32 %v838, %v873
          %v895 = vsub.f32 %v839, %v878
          %v896 = vsub.f32 %v840, %v883
          %v897 = vsub.f32 %v841, %v888
          %v898 = vld [vmem:[#allocation3] sm:$0xff]
          %v899 = vld [vmem:[#allocation3 + $0x8] sm:$0xff]
          %v900 = vld [vmem:[#allocation3 + $0x10] sm:$0xff]
          %v901 = vld [vmem:[#allocation3 + $0x18] sm:$0xff]
          %v902 = vld [vmem:[#allocation3 + $0x20] sm:$0xff]
          %v903 = vld [vmem:[#allocation3 + $0x28] sm:$0xff]
          %v904 = vld [vmem:[#allocation3 + $0x30] sm:$0xff]
          %v905 = vld [vmem:[#allocation3 + $0x38] sm:$0xff]
          %907 = vset.pattern.permute.xlu0 0
          %908 = vperm.xlu0 %907, %v898
          %v909 = vpop.permute.xlu0 %908
          %912 = vset.pattern.permute.xlu0 0
          %913 = vperm.xlu0 %912, %v899
          %v914 = vpop.permute.xlu0 %913
          %917 = vset.pattern.permute.xlu0 0
          %918 = vperm.xlu0 %917, %v900
          %v919 = vpop.permute.xlu0 %918
          %922 = vset.pattern.permute.xlu0 0
          %923 = vperm.xlu0 %922, %v901
          %v924 = vpop.permute.xlu0 %923
          %927 = vset.pattern.permute.xlu0 0
          %928 = vperm.xlu0 %927, %v902
          %v929 = vpop.permute.xlu0 %928
          %932 = vset.pattern.permute.xlu0 0
          %933 = vperm.xlu0 %932, %v903
          %v934 = vpop.permute.xlu0 %933
          %937 = vset.pattern.permute.xlu0 0
          %938 = vperm.xlu0 %937, %v904
          %v939 = vpop.permute.xlu0 %938
          %942 = vset.pattern.permute.xlu0 0
          %943 = vperm.xlu0 %942, %v905
          %v944 = vpop.permute.xlu0 %943
          %v946 = vmul.f32 %v890, %v909
          %v947 = vmul.f32 %v891, %v914
          %v948 = vmul.f32 %v892, %v919
          %v949 = vmul.f32 %v893, %v924
          %v950 = vmul.f32 %v894, %v929
          %v951 = vmul.f32 %v895, %v934
          %v952 = vmul.f32 %v896, %v939
          %v953 = vmul.f32 %v897, %v944
          %v954 = vld [vmem:[%s2] sm:$0xff]
          %v955 = vld [vmem:[%s2 + $0x8] sm:$0xff]
          %v956 = vld [vmem:[%s2 + $0x10] sm:$0xff]
          %v957 = vld [vmem:[%s2 + $0x18] sm:$0xff]
          %v958 = vld [vmem:[%s2 + $0x20] sm:$0xff]
          %v959 = vld [vmem:[%s2 + $0x28] sm:$0xff]
          %v960 = vld [vmem:[%s2 + $0x30] sm:$0xff]
          %v961 = vld [vmem:[%s2 + $0x38] sm:$0xff]
          %v962 = vld [vmem:[%s4] sm:$0xff]
          %v963 = vld [vmem:[%s4 + $0x8] sm:$0xff]
          %v964 = vld [vmem:[%s4 + $0x10] sm:$0xff]
          %v965 = vld [vmem:[%s4 + $0x18] sm:$0xff]
          %v966 = vld [vmem:[%s4 + $0x20] sm:$0xff]
          %v967 = vld [vmem:[%s4 + $0x28] sm:$0xff]
          %v968 = vld [vmem:[%s4 + $0x30] sm:$0xff]
          %v969 = vld [vmem:[%s4 + $0x38] sm:$0xff]
          %971 = vset.pattern.permute.xlu0 0
          %972 = vperm.xlu0 %971, %v962
          %v973 = vpop.permute.xlu0 %972
          %976 = vset.pattern.permute.xlu0 0
          %977 = vperm.xlu0 %976, %v963
          %v978 = vpop.permute.xlu0 %977
          %981 = vset.pattern.permute.xlu0 0
          %982 = vperm.xlu0 %981, %v964
          %v983 = vpop.permute.xlu0 %982
          %986 = vset.pattern.permute.xlu0 0
          %987 = vperm.xlu0 %986, %v965
          %v988 = vpop.permute.xlu0 %987
          %991 = vset.pattern.permute.xlu0 0
          %992 = vperm.xlu0 %991, %v966
          %v993 = vpop.permute.xlu0 %992
          %996 = vset.pattern.permute.xlu0 0
          %997 = vperm.xlu0 %996, %v967
          %v998 = vpop.permute.xlu0 %997
          %1001 = vset.pattern.permute.xlu0 0
          %1002 = vperm.xlu0 %1001, %v968
          %v1003 = vpop.permute.xlu0 %1002
          %1006 = vset.pattern.permute.xlu0 0
          %1007 = vperm.xlu0 %1006, %v969
          %v1008 = vpop.permute.xlu0 %1007
          %vm1010 = vcmask 523264
          %v1012 = vsel %vm1010, %v954, 0
          %v1015 = vsel %vm1010, %v955, 0
          %v1018 = vsel %vm1010, %v956, 0
          %v1021 = vsel %vm1010, %v957, 0
          %v1024 = vsel %vm1010, %v958, 0
          %v1027 = vsel %vm1010, %v959, 0
          %v1030 = vsel %vm1010, %v960, 0
          %v1033 = vsel %vm1010, %v961, 0
          %1035 = vmatpush.msra.mxu0 0.0
          %1036 = vmatpush.msra.mxu0 0.0
          %1037 = vmatpush.msra.mxu0 0.0
          %1038 = vmatpush.msra.mxu0 0.0
          %1039 = vmatpush.msra.mxu0 0.0
          %1040 = vmatpush.msra.mxu0 0.0
          %1041 = vmatpush.msra.mxu0 0.0
          %1042 = vmatpush.msra.mxu0 0.0
          %1043 = vmatpush.msra.mxu0 %v953
          %1044 = vmatpush.msra.mxu0 %v952
          %1045 = vmatpush.msra.mxu0 %v951
          %1046 = vmatpush.msra.mxu0 %v950
          %1047 = vmatpush.msra.mxu0 %v949
          %1048 = vmatpush.msra.mxu0 %v948
          %1049 = vmatpush.msra.mxu0 %v947
          %1050 = vmatpush.msra.mxu0 %v946
          %1051 = vmatmul.f32.gmra.mxu0 %v1012
          %v1052 = vpop.f32.mrf.mxu0
          %v1053 = vadd.f32 %v973, %v1052
          %1054 = vmatmul.f32.gmra.mxu0 %v1015
          %v1055 = vpop.f32.mrf.mxu0
          %v1056 = vadd.f32 %v978, %v1055
          %1057 = vmatmul.f32.gmra.mxu0 %v1018
          %v1058 = vpop.f32.mrf.mxu0
          %v1059 = vadd.f32 %v983, %v1058
          %1060 = vmatmul.f32.gmra.mxu0 %v1021
          %v1061 = vpop.f32.mrf.mxu0
          %v1062 = vadd.f32 %v988, %v1061
          %1063 = vmatmul.f32.gmra.mxu0 %v1024
          %v1064 = vpop.f32.mrf.mxu0
          %v1065 = vadd.f32 %v993, %v1064
          %1066 = vmatmul.f32.gmra.mxu0 %v1027
          %v1067 = vpop.f32.mrf.mxu0
          %v1068 = vadd.f32 %v998, %v1067
          %1069 = vmatmul.f32.gmra.mxu0 %v1030
          %v1070 = vpop.f32.mrf.mxu0
          %v1071 = vadd.f32 %v1003, %v1070
          %1072 = vmatmul.f32.gmra.mxu0 %v1033
          %v1073 = vpop.f32.mrf.mxu0
          %v1074 = vadd.f32 %v1008, %v1073
          %1075 = vdwg.mxu0
          %v1076 = vmax.f32 %v1053, 0.0
          %v1077 = vmax.f32 %v1056, 0.0
          %v1078 = vmax.f32 %v1059, 0.0
          %v1079 = vmax.f32 %v1062, 0.0
          %v1080 = vmax.f32 %v1065, 0.0
          %v1081 = vmax.f32 %v1068, 0.0
          %v1082 = vmax.f32 %v1071, 0.0
          %v1083 = vmax.f32 %v1074, 0.0
          %v1084 = vlaneseq
          %v1085 = vand.u32 %v1084, 127
          %s1086 = smul.u32 %s26, 128
          %v1087 = vstv %s1086
          %v1088 = vadd.s32 %v1085, %v1087
          %vm1089 = vcmp.lt.s32.totalorder %v1088, 8
          %v1090 = vsel %vm1089, 1, 0
          %v1091 = vcvt.s32.f32 %v1090
          %v1092 = vmul.f32 %v1076, %v1091
          %v1093 = vmul.f32 %v1077, %v1091
          %v1094 = vmul.f32 %v1078, %v1091
          %v1095 = vmul.f32 %v1079, %v1091
          %v1096 = vmul.f32 %v1080, %v1091
          %v1097 = vmul.f32 %v1081, %v1091
          %v1098 = vmul.f32 %v1082, %v1091
          %v1099 = vmul.f32 %v1083, %v1091
          %1100 = vadd.xlane.f32.xlu0 %v1092
          %v1101 = vpop.xlane.xlu0 %1100
          %1102 = vadd.xlane.f32.xlu0 %v1093
          %v1103 = vpop.xlane.xlu0 %1102
          %1104 = vadd.xlane.f32.xlu0 %v1094
          %v1105 = vpop.xlane.xlu0 %1104
          %1106 = vadd.xlane.f32.xlu0 %v1095
          %v1107 = vpop.xlane.xlu0 %1106
          %1108 = vadd.xlane.f32.xlu0 %v1096
          %v1109 = vpop.xlane.xlu0 %1108
          %1110 = vadd.xlane.f32.xlu0 %v1097
          %v1111 = vpop.xlane.xlu0 %1110
          %1112 = vadd.xlane.f32.xlu0 %v1098
          %v1113 = vpop.xlane.xlu0 %1112
          %1114 = vadd.xlane.f32.xlu0 %v1099
          %v1115 = vpop.xlane.xlu0 %1114
          %v1116 = vmul.f32 %v1092, %v1092
          %v1117 = vmul.f32 %v1093, %v1093
          %v1118 = vmul.f32 %v1094, %v1094
          %v1119 = vmul.f32 %v1095, %v1095
          %v1120 = vmul.f32 %v1096, %v1096
          %v1121 = vmul.f32 %v1097, %v1097
          %v1122 = vmul.f32 %v1098, %v1098
          %v1123 = vmul.f32 %v1099, %v1099
          %1124 = vadd.xlane.f32.xlu0 %v1116
          %v1125 = vpop.xlane.xlu0 %1124
          %1126 = vadd.xlane.f32.xlu0 %v1117
          %v1127 = vpop.xlane.xlu0 %1126
          %1128 = vadd.xlane.f32.xlu0 %v1118
          %v1129 = vpop.xlane.xlu0 %1128
          %1130 = vadd.xlane.f32.xlu0 %v1119
          %v1131 = vpop.xlane.xlu0 %1130
          %1132 = vadd.xlane.f32.xlu0 %v1120
          %v1133 = vpop.xlane.xlu0 %1132
          %1134 = vadd.xlane.f32.xlu0 %v1121
          %v1135 = vpop.xlane.xlu0 %1134
          %1136 = vadd.xlane.f32.xlu0 %v1122
          %v1137 = vpop.xlane.xlu0 %1136
          %1138 = vadd.xlane.f32.xlu0 %v1123
          %v1139 = vpop.xlane.xlu0 %1138
          %p1140 = scmp.eq.s32.totalorder %s26, 0
          // Predicated region
          $region73: #{tpu_custom_call.1} parent=71 // pred_check
            %p1141 = pneg %p1140
          $region74: #{tpu_custom_call.1} parent=71 // pred_check_branch
            %1143 = sbr.rel (%p1141) target = $region76
          $region75: #{tpu_custom_call.1} parent=71 // pred_region
            %vm1144 = vcmask 7168
            %1145 = vst.msk [vmem:[#allocation4] sm:$0xff] %vm1144, %v1101
            %1146 = vst.msk [vmem:[#allocation4 + $0x8] sm:$0xff] %vm1144, %v1103
            %1147 = vst.msk [vmem:[#allocation4 + $0x10] sm:$0xff] %vm1144, %v1105
            %1148 = vst.msk [vmem:[#allocation4 + $0x18] sm:$0xff] %vm1144, %v1107
            %1149 = vst.msk [vmem:[#allocation4 + $0x20] sm:$0xff] %vm1144, %v1109
            %1150 = vst.msk [vmem:[#allocation4 + $0x28] sm:$0xff] %vm1144, %v1111
            %1151 = vst.msk [vmem:[#allocation4 + $0x30] sm:$0xff] %vm1144, %v1113
            %1152 = vst.msk [vmem:[#allocation4 + $0x38] sm:$0xff] %vm1144, %v1115
            %1153 = vst.msk [vmem:[#allocation5] sm:$0xff] %vm1144, %v1125
            %1154 = vst.msk [vmem:[#allocation5 + $0x8] sm:$0xff] %vm1144, %v1127
            %1155 = vst.msk [vmem:[#allocation5 + $0x10] sm:$0xff] %vm1144, %v1129
            %1156 = vst.msk [vmem:[#allocation5 + $0x18] sm:$0xff] %vm1144, %v1131
            %1157 = vst.msk [vmem:[#allocation5 + $0x20] sm:$0xff] %vm1144, %v1133
            %1158 = vst.msk [vmem:[#allocation5 + $0x28] sm:$0xff] %vm1144, %v1135
            %1159 = vst.msk [vmem:[#allocation5 + $0x30] sm:$0xff] %vm1144, %v1137
            %1160 = vst.msk [vmem:[#allocation5 + $0x38] sm:$0xff] %vm1144, %v1139
          $region76: #{tpu_custom_call.1} parent=71 // pred_fallthru
            _
          %p1161 = scmp.gt.s32.totalorder %s26, 0
          // Predicated region
          $region77: #{tpu_custom_call.1} parent=71 // pred_check
            %p1162 = pneg %p1161
          $region78: #{tpu_custom_call.1} parent=71 // pred_check_branch
            %1164 = sbr.rel (%p1162) target = $region80
          $region79: #{tpu_custom_call.1} parent=71 // pred_region
            %v1165 = vld [vmem:[#allocation4] sm:$0xff]
            %v1166 = vld [vmem:[#allocation4 + $0x8] sm:$0xff]
            %v1167 = vld [vmem:[#allocation4 + $0x10] sm:$0xff]
            %v1168 = vld [vmem:[#allocation4 + $0x18] sm:$0xff]
            %v1169 = vld [vmem:[#allocation4 + $0x20] sm:$0xff]
            %v1170 = vld [vmem:[#allocation4 + $0x28] sm:$0xff]
            %v1171 = vld [vmem:[#allocation4 + $0x30] sm:$0xff]
            %v1172 = vld [vmem:[#allocation4 + $0x38] sm:$0xff]
            %v1173 = vadd.f32 %v1165, %v1101
            %v1174 = vadd.f32 %v1166, %v1103
            %v1175 = vadd.f32 %v1167, %v1105
            %v1176 = vadd.f32 %v1168, %v1107
            %v1177 = vadd.f32 %v1169, %v1109
            %v1178 = vadd.f32 %v1170, %v1111
            %v1179 = vadd.f32 %v1171, %v1113
            %v1180 = vadd.f32 %v1172, %v1115
            %vm1181 = vcmask 7168
            %1182 = vst.msk [vmem:[#allocation4] sm:$0xff] %vm1181, %v1173
            %1183 = vst.msk [vmem:[#allocation4 + $0x8] sm:$0xff] %vm1181, %v1174
            %1184 = vst.msk [vmem:[#allocation4 + $0x10] sm:$0xff] %vm1181, %v1175
            %1185 = vst.msk [vmem:[#allocation4 + $0x18] sm:$0xff] %vm1181, %v1176
            %1186 = vst.msk [vmem:[#allocation4 + $0x20] sm:$0xff] %vm1181, %v1177
            %1187 = vst.msk [vmem:[#allocation4 + $0x28] sm:$0xff] %vm1181, %v1178
            %1188 = vst.msk [vmem:[#allocation4 + $0x30] sm:$0xff] %vm1181, %v1179
            %1189 = vst.msk [vmem:[#allocation4 + $0x38] sm:$0xff] %vm1181, %v1180
            %v1190 = vld [vmem:[#allocation5] sm:$0xff]
            %v1191 = vld [vmem:[#allocation5 + $0x8] sm:$0xff]
            %v1192 = vld [vmem:[#allocation5 + $0x10] sm:$0xff]
            %v1193 = vld [vmem:[#allocation5 + $0x18] sm:$0xff]
            %v1194 = vld [vmem:[#allocation5 + $0x20] sm:$0xff]
            %v1195 = vld [vmem:[#allocation5 + $0x28] sm:$0xff]
            %v1196 = vld [vmem:[#allocation5 + $0x30] sm:$0xff]
            %v1197 = vld [vmem:[#allocation5 + $0x38] sm:$0xff]
            %v1198 = vadd.f32 %v1190, %v1125
            %v1199 = vadd.f32 %v1191, %v1127
            %v1200 = vadd.f32 %v1192, %v1129
            %v1201 = vadd.f32 %v1193, %v1131
            %v1202 = vadd.f32 %v1194, %v1133
            %v1203 = vadd.f32 %v1195, %v1135
            %v1204 = vadd.f32 %v1196, %v1137
            %v1205 = vadd.f32 %v1197, %v1139
            %1206 = vst.msk [vmem:[#allocation5] sm:$0xff] %vm1181, %v1198
            %1207 = vst.msk [vmem:[#allocation5 + $0x8] sm:$0xff] %vm1181, %v1199
            %1208 = vst.msk [vmem:[#allocation5 + $0x10] sm:$0xff] %vm1181, %v1200
            %1209 = vst.msk [vmem:[#allocation5 + $0x18] sm:$0xff] %vm1181, %v1201
            %1210 = vst.msk [vmem:[#allocation5 + $0x20] sm:$0xff] %vm1181, %v1202
            %1211 = vst.msk [vmem:[#allocation5 + $0x28] sm:$0xff] %vm1181, %v1203
            %1212 = vst.msk [vmem:[#allocation5 + $0x30] sm:$0xff] %vm1181, %v1204
            %1213 = vst.msk [vmem:[#allocation5 + $0x38] sm:$0xff] %vm1181, %v1205
          $region80: #{tpu_custom_call.1} parent=71 // pred_fallthru
            _
          // Predicated region
          $region81: #{tpu_custom_call.1} parent=71 // pred_check
            %p1214 = pneg %p1140
          $region82: #{tpu_custom_call.1} parent=71 // pred_check_branch
            %1216 = sbr.rel (%p1214) target = $region84
          $region83: #{tpu_custom_call.1} parent=71 // pred_region
            %v1217 = vld [vmem:[#allocation4] sm:$0xff]
            %v1218 = vld [vmem:[#allocation4 + $0x8] sm:$0xff]
            %v1219 = vld [vmem:[#allocation4 + $0x10] sm:$0xff]
            %v1220 = vld [vmem:[#allocation4 + $0x18] sm:$0xff]
            %v1221 = vld [vmem:[#allocation4 + $0x20] sm:$0xff]
            %v1222 = vld [vmem:[#allocation4 + $0x28] sm:$0xff]
            %v1223 = vld [vmem:[#allocation4 + $0x30] sm:$0xff]
            %v1224 = vld [vmem:[#allocation4 + $0x38] sm:$0xff]
            %v1225 = vmul.f32 %v1217, 0.125
            %v1226 = vmul.f32 %v1218, 0.125
            %v1227 = vmul.f32 %v1219, 0.125
            %v1228 = vmul.f32 %v1220, 0.125
            %v1229 = vmul.f32 %v1221, 0.125
            %v1230 = vmul.f32 %v1222, 0.125
            %v1231 = vmul.f32 %v1223, 0.125
            %v1232 = vmul.f32 %v1224, 0.125
            %v1233 = vld [vmem:[#allocation5] sm:$0xff]
            %v1234 = vld [vmem:[#allocation5 + $0x8] sm:$0xff]
            %v1235 = vld [vmem:[#allocation5 + $0x10] sm:$0xff]
            %v1236 = vld [vmem:[#allocation5 + $0x18] sm:$0xff]
            %v1237 = vld [vmem:[#allocation5 + $0x20] sm:$0xff]
            %v1238 = vld [vmem:[#allocation5 + $0x28] sm:$0xff]
            %v1239 = vld [vmem:[#allocation5 + $0x30] sm:$0xff]
            %v1240 = vld [vmem:[#allocation5 + $0x38] sm:$0xff]
            %v1241 = vmul.f32 %v1233, 0.125
            %v1242 = vmul.f32 %v1234, 0.125
            %v1243 = vmul.f32 %v1235, 0.125
            %v1244 = vmul.f32 %v1236, 0.125
            %v1245 = vmul.f32 %v1237, 0.125
            %v1246 = vmul.f32 %v1238, 0.125
            %v1247 = vmul.f32 %v1239, 0.125
            %v1248 = vmul.f32 %v1240, 0.125
            %v1249 = vmul.f32 %v1225, %v1225
            %v1250 = vmul.f32 %v1226, %v1226
            %v1251 = vmul.f32 %v1227, %v1227
            %v1252 = vmul.f32 %v1228, %v1228
            %v1253 = vmul.f32 %v1229, %v1229
            %v1254 = vmul.f32 %v1230, %v1230
            %v1255 = vmul.f32 %v1231, %v1231
            %v1256 = vmul.f32 %v1232, %v1232
            %v1257 = vsub.f32 %v1241, %v1249
            %v1258 = vsub.f32 %v1242, %v1250
            %v1259 = vsub.f32 %v1243, %v1251
            %v1260 = vsub.f32 %v1244, %v1252
            %v1261 = vsub.f32 %v1245, %v1253
            %v1262 = vsub.f32 %v1246, %v1254
            %v1263 = vsub.f32 %v1247, %v1255
            %v1264 = vsub.f32 %v1248, %v1256
            %vm1265 = vcmask 7168
            %1266 = vst.msk [vmem:[#allocation4] sm:$0xff] %vm1265, %v1225
            %1267 = vst.msk [vmem:[#allocation4 + $0x8] sm:$0xff] %vm1265, %v1226
            %1268 = vst.msk [vmem:[#allocation4 + $0x10] sm:$0xff] %vm1265, %v1227
            %1269 = vst.msk [vmem:[#allocation4 + $0x18] sm:$0xff] %vm1265, %v1228
            %1270 = vst.msk [vmem:[#allocation4 + $0x20] sm:$0xff] %vm1265, %v1229
            %1271 = vst.msk [vmem:[#allocation4 + $0x28] sm:$0xff] %vm1265, %v1230
            %1272 = vst.msk [vmem:[#allocation4 + $0x30] sm:$0xff] %vm1265, %v1231
            %1273 = vst.msk [vmem:[#allocation4 + $0x38] sm:$0xff] %vm1265, %v1232
            %v1274 = vadd.f32 %v1257, 1e-05
            %v1275 = vadd.f32 %v1258, 1e-05
            %v1276 = vadd.f32 %v1259, 1e-05
            %v1277 = vadd.f32 %v1260, 1e-05
            %v1278 = vadd.f32 %v1261, 1e-05
            %v1279 = vadd.f32 %v1262, 1e-05
            %v1280 = vadd.f32 %v1263, 1e-05
            %v1281 = vadd.f32 %v1264, 1e-05
            %v1282 = vrsqrt.pop %v1274
            %v1283 = vmul.f32 %v1282, %v1274
            %v1284 = vmul.f32 %v1283, %v1282
            %v1285 = vmul.f32 0.5, %v1284
            %v1286 = vsub.f32 1.5, %v1285
            %v1287 = vmul.f32 %v1282, %v1286
            %vm1288 = vweird.f32 %v1274
            %vm1289 = vweird.f32 %v1282
            %vm1290 = vmor %vm1288, %vm1289
            %v1291 = vsel %vm1290, %v1282, %v1287
            %v1292 = vrsqrt.pop %v1275
            %v1293 = vmul.f32 %v1292, %v1275
            %v1294 = vmul.f32 %v1293, %v1292
            %v1295 = vmul.f32 0.5, %v1294
            %v1296 = vsub.f32 1.5, %v1295
            %v1297 = vmul.f32 %v1292, %v1296
            %vm1298 = vweird.f32 %v1275
            %vm1299 = vweird.f32 %v1292
            %vm1300 = vmor %vm1298, %vm1299
            %v1301 = vsel %vm1300, %v1292, %v1297
            %v1302 = vrsqrt.pop %v1276
            %v1303 = vmul.f32 %v1302, %v1276
            %v1304 = vmul.f32 %v1303, %v1302
            %v1305 = vmul.f32 0.5, %v1304
            %v1306 = vsub.f32 1.5, %v1305
            %v1307 = vmul.f32 %v1302, %v1306
            %vm1308 = vweird.f32 %v1276
            %vm1309 = vweird.f32 %v1302
            %vm1310 = vmor %vm1308, %vm1309
            %v1311 = vsel %vm1310, %v1302, %v1307
            %v1312 = vrsqrt.pop %v1277
            %v1313 = vmul.f32 %v1312, %v1277
            %v1314 = vmul.f32 %v1313, %v1312
            %v1315 = vmul.f32 0.5, %v1314
            %v1316 = vsub.f32 1.5, %v1315
            %v1317 = vmul.f32 %v1312, %v1316
            %vm1318 = vweird.f32 %v1277
            %vm1319 = vweird.f32 %v1312
            %vm1320 = vmor %vm1318, %vm1319
            %v1321 = vsel %vm1320, %v1312, %v1317
            %v1322 = vrsqrt.pop %v1278
            %v1323 = vmul.f32 %v1322, %v1278
            %v1324 = vmul.f32 %v1323, %v1322
            %v1325 = vmul.f32 0.5, %v1324
            %v1326 = vsub.f32 1.5, %v1325
            %v1327 = vmul.f32 %v1322, %v1326
            %vm1328 = vweird.f32 %v1278
            %vm1329 = vweird.f32 %v1322
            %vm1330 = vmor %vm1328, %vm1329
            %v1331 = vsel %vm1330, %v1322, %v1327
            %v1332 = vrsqrt.pop %v1279
            %v1333 = vmul.f32 %v1332, %v1279
            %v1334 = vmul.f32 %v1333, %v1332
            %v1335 = vmul.f32 0.5, %v1334
            %v1336 = vsub.f32 1.5, %v1335
            %v1337 = vmul.f32 %v1332, %v1336
            %vm1338 = vweird.f32 %v1279
            %vm1339 = vweird.f32 %v1332
            %vm1340 = vmor %vm1338, %vm1339
            %v1341 = vsel %vm1340, %v1332, %v1337
            %v1342 = vrsqrt.pop %v1280
            %v1343 = vmul.f32 %v1342, %v1280
            %v1344 = vmul.f32 %v1343, %v1342
            %v1345 = vmul.f32 0.5, %v1344
            %v1346 = vsub.f32 1.5, %v1345
            %v1347 = vmul.f32 %v1342, %v1346
            %vm1348 = vweird.f32 %v1280
            %vm1349 = vweird.f32 %v1342
            %vm1350 = vmor %vm1348, %vm1349
            %v1351 = vsel %vm1350, %v1342, %v1347
            %v1352 = vrsqrt.pop %v1281
            %v1353 = vmul.f32 %v1352, %v1281
            %v1354 = vmul.f32 %v1353, %v1352
            %v1355 = vmul.f32 0.5, %v1354
            %v1356 = vsub.f32 1.5, %v1355
            %v1357 = vmul.f32 %v1352, %v1356
            %vm1358 = vweird.f32 %v1281
            %vm1359 = vweird.f32 %v1352
            %vm1360 = vmor %vm1358, %vm1359
            %v1361 = vsel %vm1360, %v1352, %v1357
            %1362 = vst.msk [vmem:[#allocation5] sm:$0xff] %vm1265, %v1291
            %1363 = vst.msk [vmem:[#allocation5 + $0x8] sm:$0xff] %vm1265, %v1301
            %1364 = vst.msk [vmem:[#allocation5 + $0x10] sm:$0xff] %vm1265, %v1311
            %1365 = vst.msk [vmem:[#allocation5 + $0x18] sm:$0xff] %vm1265, %v1321
            %1366 = vst.msk [vmem:[#allocation5 + $0x20] sm:$0xff] %vm1265, %v1331
            %1367 = vst.msk [vmem:[#allocation5 + $0x28] sm:$0xff] %vm1265, %v1341
            %1368 = vst.msk [vmem:[#allocation5 + $0x30] sm:$0xff] %vm1265, %v1351
            %1369 = vst.msk [vmem:[#allocation5 + $0x38] sm:$0xff] %vm1265, %v1361
          $region84: #{tpu_custom_call.1} parent=71 // pred_fallthru
            _
        $region72: #{tpu_custom_call.1} parent=47 // pred_fallthru
          _
        %p1370 = scmp.eq.s32.totalorder %s25, 2
        // Predicated region
        $region85: #{tpu_custom_call.1} parent=47 // pred_check
          %p1371 = pneg %p1370
        $region86: #{tpu_custom_call.1} parent=47 // pred_check_branch
          %1373 = sbr.rel (%p1371) target = $region88
        $region87: #{tpu_custom_call.1} parent=47 // pred_region
          %v1374 = vld [vmem:[%s1] sm:$0xff]
          %v1375 = vld [vmem:[%s1 + $0x8] sm:$0xff]
          %v1376 = vld [vmem:[%s1 + $0x10] sm:$0xff]
          %v1377 = vld [vmem:[%s1 + $0x18] sm:$0xff]
          %v1378 = vld [vmem:[%s1 + $0x20] sm:$0xff]
          %v1379 = vld [vmem:[%s1 + $0x28] sm:$0xff]
          %v1380 = vld [vmem:[%s1 + $0x30] sm:$0xff]
          %v1381 = vld [vmem:[%s1 + $0x38] sm:$0xff]
          %v1382 = vld [vmem:[%s280] sm:$0xff]
          %v1383 = vld [vmem:[%s3] sm:$0xff]
          %v1384 = vld [vmem:[%s3 + $0x8] sm:$0xff]
          %v1385 = vld [vmem:[%s3 + $0x10] sm:$0xff]
          %v1386 = vld [vmem:[%s3 + $0x18] sm:$0xff]
          %v1387 = vld [vmem:[%s3 + $0x20] sm:$0xff]
          %v1388 = vld [vmem:[%s3 + $0x28] sm:$0xff]
          %v1389 = vld [vmem:[%s3 + $0x30] sm:$0xff]
          %v1390 = vld [vmem:[%s3 + $0x38] sm:$0xff]
          %1392 = vset.pattern.permute.xlu0 0
          %1393 = vperm.xlu0 %1392, %v1383
          %v1394 = vpop.permute.xlu0 %1393
          %1397 = vset.pattern.permute.xlu0 0
          %1398 = vperm.xlu0 %1397, %v1384
          %v1399 = vpop.permute.xlu0 %1398
          %1402 = vset.pattern.permute.xlu0 0
          %1403 = vperm.xlu0 %1402, %v1385
          %v1404 = vpop.permute.xlu0 %1403
          %1407 = vset.pattern.permute.xlu0 0
          %1408 = vperm.xlu0 %1407, %v1386
          %v1409 = vpop.permute.xlu0 %1408
          %1412 = vset.pattern.permute.xlu0 0
          %1413 = vperm.xlu0 %1412, %v1387
          %v1414 = vpop.permute.xlu0 %1413
          %1417 = vset.pattern.permute.xlu0 0
          %1418 = vperm.xlu0 %1417, %v1388
          %v1419 = vpop.permute.xlu0 %1418
          %1422 = vset.pattern.permute.xlu0 0
          %1423 = vperm.xlu0 %1422, %v1389
          %v1424 = vpop.permute.xlu0 %1423
          %1427 = vset.pattern.permute.xlu0 0
          %1428 = vperm.xlu0 %1427, %v1390
          %v1429 = vpop.permute.xlu0 %1428
          %vm1431 = vcmask 64512
          %v1433 = vsel %vm1431, %v1374, 0
          %v1436 = vsel %vm1431, %v1375, 0
          %v1439 = vsel %vm1431, %v1376, 0
          %v1442 = vsel %vm1431, %v1377, 0
          %v1445 = vsel %vm1431, %v1378, 0
          %v1448 = vsel %vm1431, %v1379, 0
          %v1451 = vsel %vm1431, %v1380, 0
          %v1454 = vsel %vm1431, %v1381, 0
          %1456 = vmatpush.msra.mxu0 0.0
          %1457 = vmatpush.msra.mxu0 0.0
          %1458 = vmatpush.msra.mxu0 0.0
          %1459 = vmatpush.msra.mxu0 0.0
          %1460 = vmatpush.msra.mxu0 0.0
          %1461 = vmatpush.msra.mxu0 0.0
          %1462 = vmatpush.msra.mxu0 0.0
          %1463 = vmatpush.msra.mxu0 0.0
          %1464 = vmatpush.msra.mxu0 0.0
          %1465 = vmatpush.msra.mxu0 0.0
          %1466 = vmatpush.msra.mxu0 0.0
          %1467 = vmatpush.msra.mxu0 0.0
          %1468 = vmatpush.msra.mxu0 0.0
          %1469 = vmatpush.msra.mxu0 0.0
          %1470 = vmatpush.msra.mxu0 0.0
          %1471 = vmatpush.msra.mxu0 %v1382
          %1472 = vmatmul.f32.gmra.mxu0 %v1433
          %v1473 = vpop.f32.mrf.mxu0
          %v1474 = vadd.f32 %v1394, %v1473
          %1475 = vmatmul.f32.gmra.mxu0 %v1436
          %v1476 = vpop.f32.mrf.mxu0
          %v1477 = vadd.f32 %v1399, %v1476
          %1478 = vmatmul.f32.gmra.mxu0 %v1439
          %v1479 = vpop.f32.mrf.mxu0
          %v1480 = vadd.f32 %v1404, %v1479
          %1481 = vmatmul.f32.gmra.mxu0 %v1442
          %v1482 = vpop.f32.mrf.mxu0
          %v1483 = vadd.f32 %v1409, %v1482
          %1484 = vmatmul.f32.gmra.mxu0 %v1445
          %v1485 = vpop.f32.mrf.mxu0
          %v1486 = vadd.f32 %v1414, %v1485
          %1487 = vmatmul.f32.gmra.mxu0 %v1448
          %v1488 = vpop.f32.mrf.mxu0
          %v1489 = vadd.f32 %v1419, %v1488
          %1490 = vmatmul.f32.gmra.mxu0 %v1451
          %v1491 = vpop.f32.mrf.mxu0
          %v1492 = vadd.f32 %v1424, %v1491
          %1493 = vmatmul.f32.gmra.mxu0 %v1454
          %v1494 = vpop.f32.mrf.mxu0
          %v1495 = vadd.f32 %v1429, %v1494
          %1496 = vdwg.mxu0
          %v1497 = vmax.f32 %v1474, 0.0
          %v1498 = vmax.f32 %v1477, 0.0
          %v1499 = vmax.f32 %v1480, 0.0
          %v1500 = vmax.f32 %v1483, 0.0
          %v1501 = vmax.f32 %v1486, 0.0
          %v1502 = vmax.f32 %v1489, 0.0
          %v1503 = vmax.f32 %v1492, 0.0
          %v1504 = vmax.f32 %v1495, 0.0
          %v1505 = vld [vmem:[#allocation2] sm:$0xff]
          %v1506 = vld [vmem:[#allocation2 + $0x8] sm:$0xff]
          %v1507 = vld [vmem:[#allocation2 + $0x10] sm:$0xff]
          %v1508 = vld [vmem:[#allocation2 + $0x18] sm:$0xff]
          %v1509 = vld [vmem:[#allocation2 + $0x20] sm:$0xff]
          %v1510 = vld [vmem:[#allocation2 + $0x28] sm:$0xff]
          %v1511 = vld [vmem:[#allocation2 + $0x30] sm:$0xff]
          %v1512 = vld [vmem:[#allocation2 + $0x38] sm:$0xff]
          %1514 = vset.pattern.permute.xlu0 0
          %1515 = vperm.xlu0 %1514, %v1505
          %v1516 = vpop.permute.xlu0 %1515
          %1519 = vset.pattern.permute.xlu0 0
          %1520 = vperm.xlu0 %1519, %v1506
          %v1521 = vpop.permute.xlu0 %1520
          %1524 = vset.pattern.permute.xlu0 0
          %1525 = vperm.xlu0 %1524, %v1507
          %v1526 = vpop.permute.xlu0 %1525
          %1529 = vset.pattern.permute.xlu0 0
          %1530 = vperm.xlu0 %1529, %v1508
          %v1531 = vpop.permute.xlu0 %1530
          %1534 = vset.pattern.permute.xlu0 0
          %1535 = vperm.xlu0 %1534, %v1509
          %v1536 = vpop.permute.xlu0 %1535
          %1539 = vset.pattern.permute.xlu0 0
          %1540 = vperm.xlu0 %1539, %v1510
          %v1541 = vpop.permute.xlu0 %1540
          %1544 = vset.pattern.permute.xlu0 0
          %1545 = vperm.xlu0 %1544, %v1511
          %v1546 = vpop.permute.xlu0 %1545
          %1549 = vset.pattern.permute.xlu0 0
          %1550 = vperm.xlu0 %1549, %v1512
          %v1551 = vpop.permute.xlu0 %1550
          %v1553 = vsub.f32 %v1497, %v1516
          %v1554 = vsub.f32 %v1498, %v1521
          %v1555 = vsub.f32 %v1499, %v1526
          %v1556 = vsub.f32 %v1500, %v1531
          %v1557 = vsub.f32 %v1501, %v1536
          %v1558 = vsub.f32 %v1502, %v1541
          %v1559 = vsub.f32 %v1503, %v1546
          %v1560 = vsub.f32 %v1504, %v1551
          %v1561 = vld [vmem:[#allocation3] sm:$0xff]
          %v1562 = vld [vmem:[#allocation3 + $0x8] sm:$0xff]
          %v1563 = vld [vmem:[#allocation3 + $0x10] sm:$0xff]
          %v1564 = vld [vmem:[#allocation3 + $0x18] sm:$0xff]
          %v1565 = vld [vmem:[#allocation3 + $0x20] sm:$0xff]
          %v1566 = vld [vmem:[#allocation3 + $0x28] sm:$0xff]
          %v1567 = vld [vmem:[#allocation3 + $0x30] sm:$0xff]
          %v1568 = vld [vmem:[#allocation3 + $0x38] sm:$0xff]
          %1570 = vset.pattern.permute.xlu0 0
          %1571 = vperm.xlu0 %1570, %v1561
          %v1572 = vpop.permute.xlu0 %1571
          %1575 = vset.pattern.permute.xlu0 0
          %1576 = vperm.xlu0 %1575, %v1562
          %v1577 = vpop.permute.xlu0 %1576
          %1580 = vset.pattern.permute.xlu0 0
          %1581 = vperm.xlu0 %1580, %v1563
          %v1582 = vpop.permute.xlu0 %1581
          %1585 = vset.pattern.permute.xlu0 0
          %1586 = vperm.xlu0 %1585, %v1564
          %v1587 = vpop.permute.xlu0 %1586
          %1590 = vset.pattern.permute.xlu0 0
          %1591 = vperm.xlu0 %1590, %v1565
          %v1592 = vpop.permute.xlu0 %1591
          %1595 = vset.pattern.permute.xlu0 0
          %1596 = vperm.xlu0 %1595, %v1566
          %v1597 = vpop.permute.xlu0 %1596
          %1600 = vset.pattern.permute.xlu0 0
          %1601 = vperm.xlu0 %1600, %v1567
          %v1602 = vpop.permute.xlu0 %1601
          %1605 = vset.pattern.permute.xlu0 0
          %1606 = vperm.xlu0 %1605, %v1568
          %v1607 = vpop.permute.xlu0 %1606
          %v1609 = vmul.f32 %v1553, %v1572
          %v1610 = vmul.f32 %v1554, %v1577
          %v1611 = vmul.f32 %v1555, %v1582
          %v1612 = vmul.f32 %v1556, %v1587
          %v1613 = vmul.f32 %v1557, %v1592
          %v1614 = vmul.f32 %v1558, %v1597
          %v1615 = vmul.f32 %v1559, %v1602
          %v1616 = vmul.f32 %v1560, %v1607
          %v1617 = vld [vmem:[%s2] sm:$0xff]
          %v1618 = vld [vmem:[%s2 + $0x8] sm:$0xff]
          %v1619 = vld [vmem:[%s2 + $0x10] sm:$0xff]
          %v1620 = vld [vmem:[%s2 + $0x18] sm:$0xff]
          %v1621 = vld [vmem:[%s2 + $0x20] sm:$0xff]
          %v1622 = vld [vmem:[%s2 + $0x28] sm:$0xff]
          %v1623 = vld [vmem:[%s2 + $0x30] sm:$0xff]
          %v1624 = vld [vmem:[%s2 + $0x38] sm:$0xff]
          %v1625 = vld [vmem:[%s4] sm:$0xff]
          %v1626 = vld [vmem:[%s4 + $0x8] sm:$0xff]
          %v1627 = vld [vmem:[%s4 + $0x10] sm:$0xff]
          %v1628 = vld [vmem:[%s4 + $0x18] sm:$0xff]
          %v1629 = vld [vmem:[%s4 + $0x20] sm:$0xff]
          %v1630 = vld [vmem:[%s4 + $0x28] sm:$0xff]
          %v1631 = vld [vmem:[%s4 + $0x30] sm:$0xff]
          %v1632 = vld [vmem:[%s4 + $0x38] sm:$0xff]
          %1634 = vset.pattern.permute.xlu0 0
          %1635 = vperm.xlu0 %1634, %v1625
          %v1636 = vpop.permute.xlu0 %1635
          %1639 = vset.pattern.permute.xlu0 0
          %1640 = vperm.xlu0 %1639, %v1626
          %v1641 = vpop.permute.xlu0 %1640
          %1644 = vset.pattern.permute.xlu0 0
          %1645 = vperm.xlu0 %1644, %v1627
          %v1646 = vpop.permute.xlu0 %1645
          %1649 = vset.pattern.permute.xlu0 0
          %1650 = vperm.xlu0 %1649, %v1628
          %v1651 = vpop.permute.xlu0 %1650
          %1654 = vset.pattern.permute.xlu0 0
          %1655 = vperm.xlu0 %1654, %v1629
          %v1656 = vpop.permute.xlu0 %1655
          %1659 = vset.pattern.permute.xlu0 0
          %1660 = vperm.xlu0 %1659, %v1630
          %v1661 = vpop.permute.xlu0 %1660
          %1664 = vset.pattern.permute.xlu0 0
          %1665 = vperm.xlu0 %1664, %v1631
          %v1666 = vpop.permute.xlu0 %1665
          %1669 = vset.pattern.permute.xlu0 0
          %1670 = vperm.xlu0 %1669, %v1632
          %v1671 = vpop.permute.xlu0 %1670
          %vm1673 = vcmask 523264
          %v1675 = vsel %vm1673, %v1617, 0
          %v1678 = vsel %vm1673, %v1618, 0
          %v1681 = vsel %vm1673, %v1619, 0
          %v1684 = vsel %vm1673, %v1620, 0
          %v1687 = vsel %vm1673, %v1621, 0
          %v1690 = vsel %vm1673, %v1622, 0
          %v1693 = vsel %vm1673, %v1623, 0
          %v1696 = vsel %vm1673, %v1624, 0
          %1698 = vmatpush.msra.mxu0 0.0
          %1699 = vmatpush.msra.mxu0 0.0
          %1700 = vmatpush.msra.mxu0 0.0
          %1701 = vmatpush.msra.mxu0 0.0
          %1702 = vmatpush.msra.mxu0 0.0
          %1703 = vmatpush.msra.mxu0 0.0
          %1704 = vmatpush.msra.mxu0 0.0
          %1705 = vmatpush.msra.mxu0 0.0
          %1706 = vmatpush.msra.mxu0 %v1616
          %1707 = vmatpush.msra.mxu0 %v1615
          %1708 = vmatpush.msra.mxu0 %v1614
          %1709 = vmatpush.msra.mxu0 %v1613
          %1710 = vmatpush.msra.mxu0 %v1612
          %1711 = vmatpush.msra.mxu0 %v1611
          %1712 = vmatpush.msra.mxu0 %v1610
          %1713 = vmatpush.msra.mxu0 %v1609
          %1714 = vmatmul.f32.gmra.mxu0 %v1675
          %v1715 = vpop.f32.mrf.mxu0
          %v1716 = vadd.f32 %v1636, %v1715
          %1717 = vmatmul.f32.gmra.mxu0 %v1678
          %v1718 = vpop.f32.mrf.mxu0
          %v1719 = vadd.f32 %v1641, %v1718
          %1720 = vmatmul.f32.gmra.mxu0 %v1681
          %v1721 = vpop.f32.mrf.mxu0
          %v1722 = vadd.f32 %v1646, %v1721
          %1723 = vmatmul.f32.gmra.mxu0 %v1684
          %v1724 = vpop.f32.mrf.mxu0
          %v1725 = vadd.f32 %v1651, %v1724
          %1726 = vmatmul.f32.gmra.mxu0 %v1687
          %v1727 = vpop.f32.mrf.mxu0
          %v1728 = vadd.f32 %v1656, %v1727
          %1729 = vmatmul.f32.gmra.mxu0 %v1690
          %v1730 = vpop.f32.mrf.mxu0
          %v1731 = vadd.f32 %v1661, %v1730
          %1732 = vmatmul.f32.gmra.mxu0 %v1693
          %v1733 = vpop.f32.mrf.mxu0
          %v1734 = vadd.f32 %v1666, %v1733
          %1735 = vmatmul.f32.gmra.mxu0 %v1696
          %v1736 = vpop.f32.mrf.mxu0
          %v1737 = vadd.f32 %v1671, %v1736
          %1738 = vdwg.mxu0
          %v1739 = vmax.f32 %v1716, 0.0
          %v1740 = vmax.f32 %v1719, 0.0
          %v1741 = vmax.f32 %v1722, 0.0
          %v1742 = vmax.f32 %v1725, 0.0
          %v1743 = vmax.f32 %v1728, 0.0
          %v1744 = vmax.f32 %v1731, 0.0
          %v1745 = vmax.f32 %v1734, 0.0
          %v1746 = vmax.f32 %v1737, 0.0
          %v1747 = vld [vmem:[#allocation4] sm:$0xff]
          %v1748 = vld [vmem:[#allocation4 + $0x8] sm:$0xff]
          %v1749 = vld [vmem:[#allocation4 + $0x10] sm:$0xff]
          %v1750 = vld [vmem:[#allocation4 + $0x18] sm:$0xff]
          %v1751 = vld [vmem:[#allocation4 + $0x20] sm:$0xff]
          %v1752 = vld [vmem:[#allocation4 + $0x28] sm:$0xff]
          %v1753 = vld [vmem:[#allocation4 + $0x30] sm:$0xff]
          %v1754 = vld [vmem:[#allocation4 + $0x38] sm:$0xff]
          %1756 = vset.pattern.permute.xlu0 0
          %1757 = vperm.xlu0 %1756, %v1747
          %v1758 = vpop.permute.xlu0 %1757
          %1761 = vset.pattern.permute.xlu0 0
          %1762 = vperm.xlu0 %1761, %v1748
          %v1763 = vpop.permute.xlu0 %1762
          %1766 = vset.pattern.permute.xlu0 0
          %1767 = vperm.xlu0 %1766, %v1749
          %v1768 = vpop.permute.xlu0 %1767
          %1771 = vset.pattern.permute.xlu0 0
          %1772 = vperm.xlu0 %1771, %v1750
          %v1773 = vpop.permute.xlu0 %1772
          %1776 = vset.pattern.permute.xlu0 0
          %1777 = vperm.xlu0 %1776, %v1751
          %v1778 = vpop.permute.xlu0 %1777
          %1781 = vset.pattern.permute.xlu0 0
          %1782 = vperm.xlu0 %1781, %v1752
          %v1783 = vpop.permute.xlu0 %1782
          %1786 = vset.pattern.permute.xlu0 0
          %1787 = vperm.xlu0 %1786, %v1753
          %v1788 = vpop.permute.xlu0 %1787
          %1791 = vset.pattern.permute.xlu0 0
          %1792 = vperm.xlu0 %1791, %v1754
          %v1793 = vpop.permute.xlu0 %1792
          %v1795 = vsub.f32 %v1739, %v1758
          %v1796 = vsub.f32 %v1740, %v1763
          %v1797 = vsub.f32 %v1741, %v1768
          %v1798 = vsub.f32 %v1742, %v1773
          %v1799 = vsub.f32 %v1743, %v1778
          %v1800 = vsub.f32 %v1744, %v1783
          %v1801 = vsub.f32 %v1745, %v1788
          %v1802 = vsub.f32 %v1746, %v1793
          %v1803 = vld [vmem:[#allocation5] sm:$0xff]
          %v1804 = vld [vmem:[#allocation5 + $0x8] sm:$0xff]
          %v1805 = vld [vmem:[#allocation5 + $0x10] sm:$0xff]
          %v1806 = vld [vmem:[#allocation5 + $0x18] sm:$0xff]
          %v1807 = vld [vmem:[#allocation5 + $0x20] sm:$0xff]
          %v1808 = vld [vmem:[#allocation5 + $0x28] sm:$0xff]
          %v1809 = vld [vmem:[#allocation5 + $0x30] sm:$0xff]
          %v1810 = vld [vmem:[#allocation5 + $0x38] sm:$0xff]
          %1812 = vset.pattern.permute.xlu0 0
          %1813 = vperm.xlu0 %1812, %v1803
          %v1814 = vpop.permute.xlu0 %1813
          %1817 = vset.pattern.permute.xlu0 0
          %1818 = vperm.xlu0 %1817, %v1804
          %v1819 = vpop.permute.xlu0 %1818
          %1822 = vset.pattern.permute.xlu0 0
          %1823 = vperm.xlu0 %1822, %v1805
          %v1824 = vpop.permute.xlu0 %1823
          %1827 = vset.pattern.permute.xlu0 0
          %1828 = vperm.xlu0 %1827, %v1806
          %v1829 = vpop.permute.xlu0 %1828
          %1832 = vset.pattern.permute.xlu0 0
          %1833 = vperm.xlu0 %1832, %v1807
          %v1834 = vpop.permute.xlu0 %1833
          %1837 = vset.pattern.permute.xlu0 0
          %1838 = vperm.xlu0 %1837, %v1808
          %v1839 = vpop.permute.xlu0 %1838
          %1842 = vset.pattern.permute.xlu0 0
          %1843 = vperm.xlu0 %1842, %v1809
          %v1844 = vpop.permute.xlu0 %1843
          %1847 = vset.pattern.permute.xlu0 0
          %1848 = vperm.xlu0 %1847, %v1810
          %v1849 = vpop.permute.xlu0 %1848
          %v1851 = vmul.f32 %v1795, %v1814
          %v1852 = vmul.f32 %v1796, %v1819
          %v1853 = vmul.f32 %v1797, %v1824
          %v1854 = vmul.f32 %v1798, %v1829
          %v1855 = vmul.f32 %v1799, %v1834
          %v1856 = vmul.f32 %v1800, %v1839
          %v1857 = vmul.f32 %v1801, %v1844
          %v1858 = vmul.f32 %v1802, %v1849
          %v1859 = vld [vmem:[%s5] sm:$0x1]
          %v1860 = vld [vmem:[#allocation6] sm:$0x1]
          %1862 = vset.pattern.permute.xlu0 0
          %1863 = vperm.xlu0 %1862, %v1860
          %v1864 = vpop.permute.xlu0 %1863
          %v1866 = vperm.slane %v1864, 0
          %v1868 = vsel %vm1673, %v1859, 0
          %1870 = vmatpush.msra.mxu0 0.0
          %1871 = vmatpush.msra.mxu0 0.0
          %1872 = vmatpush.msra.mxu0 0.0
          %1873 = vmatpush.msra.mxu0 0.0
          %1874 = vmatpush.msra.mxu0 0.0
          %1875 = vmatpush.msra.mxu0 0.0
          %1876 = vmatpush.msra.mxu0 0.0
          %1877 = vmatpush.msra.mxu0 0.0
          %1878 = vmatpush.msra.mxu0 %v1858
          %1879 = vmatpush.msra.mxu0 %v1857
          %1880 = vmatpush.msra.mxu0 %v1856
          %1881 = vmatpush.msra.mxu0 %v1855
          %1882 = vmatpush.msra.mxu0 %v1854
          %1883 = vmatpush.msra.mxu0 %v1853
          %1884 = vmatpush.msra.mxu0 %v1852
          %1885 = vmatpush.msra.mxu0 %v1851
          %1886 = vmatmul.f32.gmra.mxu0 %v1868
          %v1887 = vpop.f32.mrf.mxu0
          %v1888 = vadd.f32 %v1866, %v1887
          %1889 = vdwg.mxu0
          %1890 = vst [vmem:[#allocation7] sm:$0x1] %v1888
        $region88: #{tpu_custom_call.1} parent=47 // pred_fallthru
          _
        // Predicated region
        $region89: #{tpu_custom_call.1} parent=47 // pred_check
          %p1891 = pneg %p203
        $region90: #{tpu_custom_call.1} parent=47 // pred_check_branch
          %1893 = sbr.rel (%p1891) target = $region92
        $region91: #{tpu_custom_call.1} parent=47 // pred_region
          %1895 = vsyncadd [#allocation8], 0
          %s1896 = scalar_lea.hbm %s7, %s26
          %s1898 = sshll.u32 [#allocation7], 4
          %s1899 = int_to_ptr.vmem [resolvable:$true] %s1898
          %s1900 = sshll.u32 %s1896, 4
          %s1901 = int_to_ptr.hbm [resolvable:$true] %s1900
          %1903 = dma.vmem_to_hbm [thread:$0]  %s1899, 16, %s1901, [#allocation8]
        $region92: #{tpu_custom_call.1} parent=47 // pred_fallthru
          _
        // Predicated region
        $region93: #{tpu_custom_call.1} parent=47 // pred_check
          %p1904 = pneg %p203
        $region94: #{tpu_custom_call.1} parent=47 // pred_check_branch
          %1906 = sbr.rel (%p1904) target = $region96
        $region95: #{tpu_custom_call.1} parent=47 // pred_region
          %1908 = dma.done [#allocation8], 16
        $region96: #{tpu_custom_call.1} parent=47 // pred_fallthru
          _
      $region48: #{tpu_custom_call.1} parent=5 // pred_fallthru
        _
      %p1909 = scmp.le.s32.totalorder 2, %s16
      // Predicated region
      $region97: #{tpu_custom_call.1} parent=5 // pred_check
        %p1910 = pneg %p1909
      $region98: #{tpu_custom_call.1} parent=5 // pred_check_branch
        %1912 = sbr.rel (%p1910) target = $region100
      $region99: #{tpu_custom_call.1} parent=5 // pred_region
        %s1913 = ssub.s32 %s16, 2
      $region100: #{tpu_custom_call.1} parent=5 // pred_fallthru
        _
    $region6: #{tpu_custom_call.1} parent=1 // loop_footer
      %s20 = sadd.s32 1, %s16
    $region7: #{tpu_custom_call.1} parent=1 // loop_footer_branch
      %15 = sbr.rel target = $region3
    $region8: #{tpu_custom_call.1} parent=1 // loop_exit
      _
    %1914 = vsyncpa [#allocation8], 1
    %s1915 = scalar_lea.sflag [#allocation8], 1
    %1916 = vsyncpa %s1915, 1

</llo_original>
